<compile_context>
chip_gen: v7x
topology: tpu7x:2x2x1
jax: 0.10.0
libtpu: 0.0.40
codegen_flags: <defaults>
</compile_context>

<pallas_src>
import functools
import math

import jax
import jax.numpy as jnp
from jax import lax
from jax.experimental import pallas as pl
from jax.experimental.pallas import tpu as pltpu

_LANE = 128      # vreg lane width
_SUB = 8         # f32 sublane count
_BF16_SUB = 16   # bf16 sublane packing
_FORI_T = 16     # below this sequence length, statically unroll the GRU time loop


def _ceil_to(n, m):
    return ((n + m - 1) // m) * m


def _pad_axis(a, axis, size):
    if a.shape[axis] == size:
        return a
    pads = [(0, 0)] * a.ndim
    pads[axis] = (0, size - a.shape[axis])
    return jnp.pad(a, pads)


def _nbytes(shape, dtype):
    return int(math.prod(shape)) * jnp.dtype(dtype).itemsize


# ----------------------------------------------------------------------------
# Fused kernel: image embedding + GRU encoder + decoder epilogue.
# ----------------------------------------------------------------------------
def _vqa_fused_kernel(x_ref, wi_hbm, bi_ref,
                      q_ref, len_ref,
                      wx_ref, bx_ref, wh_ref, bh_ref,
                      wd_ref, bd_ref,
                      o_ref,
                      wi_vmem, wi_sem, gx_ref,
                      *, T, unroll_time):
    Bp = x_ref.shape[0]          # padded batch (multiple of 8 sublanes)
    Hp = wh_ref.shape[0]         # padded per-gate hidden (multiple of 128 lanes)

    # (1) Kick off the big wi HBM->VMEM fetch now; it overlaps with the serial,
    #     latency-bound GRU below and is waited on only right before the image matmul.
    wi_cp = pltpu.make_async_copy(wi_hbm, wi_vmem, wi_sem)
    wi_cp.start()

    # (2) GRU input projection hoisted out of the time loop: ONE MXU call over
    #     [T*Bp, Ep] @ [Ep, 3*Hp]; parked in VMEM scratch so the loop re-reads
    #     aligned row blocks (bounds live ranges for long sequences).
    gx_ref[...] = (jnp.dot(q_ref[...], wx_ref[...],
                           preferred_element_type=jnp.float32) + bx_ref[...])

    # Per-row sequence-length mask, lane-broadcast once (hoisted out of the loop).
    lenb = jnp.broadcast_to(len_ref[...], (Bp, Hp))

    def gru_step(t, h, gx):
        gh = (jnp.dot(h.astype(wh_ref.dtype), wh_ref[...],
                      preferred_element_type=jnp.float32) + bh_ref[...])
        # gates ordered [r | z | n]; per-gate padding -> lane-aligned (free) slices
        r = jax.nn.sigmoid(gx[:, 0:Hp] + gh[:, 0:Hp])
        z = jax.nn.sigmoid(gx[:, Hp:2 * Hp] + gh[:, Hp:2 * Hp])
        n = jnp.tanh(gx[:, 2 * Hp:3 * Hp] + r * gh[:, 2 * Hp:3 * Hp])
        h_new = (1.0 - z) * n + z * h
        return jnp.where(t < lenb, h_new, h)   # freeze rows whose sequence ended

    h0 = jnp.zeros((Bp, Hp), dtype=jnp.float32)
    if unroll_time:
        # Small, compile-time-known T: static unroll (LLO sees the whole chain).
        h = h0
        for t in range(T):
            h = gru_step(t, h, gx_ref[t * Bp:(t + 1) * Bp, :])
    else:
        # Larger T: fori_loop bounds live ranges; aligned dynamic row-block reads.
        def body(t, h):
            gx = gx_ref[pl.ds(pl.multiple_of(t * Bp, _SUB), Bp), :]
            return gru_step(t, h, gx)
        h = lax.fori_loop(0, T, body, h0, unroll=2)

    # (3) Image embedding last: wait for wi only now (DMA hidden behind the GRU).
    wi_cp.wait()
    i_embed = jnp.tanh(
        jnp.dot(x_ref[...], wi_vmem[...], preferred_element_type=jnp.float32)
        + bi_ref[...])

    # (4) Decoder epilogue on i_embed * h (lane-dense f32 store).
    fused = (i_embed * h).astype(wd_ref.dtype)
    o_ref[...] = (jnp.dot(fused, wd_ref[...],
                          preferred_element_type=jnp.float32) + bd_ref[...])


# ----------------------------------------------------------------------------
# One-time parameter relayout (amortized across calls).
# ----------------------------------------------------------------------------
def prepare_vqa_params(params):
    """Pad / reorder / cast the VQA parameters once. Returns (prepped, meta)."""
    D, Hd = params["wi"].shape
    E = params["wx"].shape[0]
    A = params["wd"].shape[1]

    Dp = _ceil_to(D, _BF16_SUB)
    Ep = _ceil_to(E, _LANE)
    Hp = _ceil_to(Hd, _LANE)   # NOTE: pick Hd as a multiple of 128 for real models
    Ap = _ceil_to(A, _LANE)

    def pad_gates(w):
        # split [.., 3*Hd] into r|z|n and pad each gate to Hp so in-kernel gate
        # slices land exactly on 128-lane vreg boundaries.
        ax = w.ndim - 1
        gates = [w[..., g * Hd:(g + 1) * Hd] for g in range(3)]
        return jnp.concatenate([_pad_axis(g, ax, Hp) for g in gates], axis=ax)

    prepped = {
        "wi": _pad_axis(_pad_axis(params["wi"], 1, Hp), 0, Dp).astype(jnp.bfloat16),
        "bi": _pad_axis(params["bi"], 1, Hp).astype(jnp.float32),
        "wx": _pad_axis(pad_gates(params["wx"]), 0, Ep).astype(jnp.bfloat16),
        "bx": pad_gates(params["bx"]).astype(jnp.float32),
        "wh": _pad_axis(pad_gates(params["wh"]), 0, Hp).astype(jnp.bfloat16),
        "bh": pad_gates(params["bh"]).astype(jnp.float32),
        "wd": _pad_axis(_pad_axis(params["wd"], 1, Ap), 0, Hp).astype(jnp.bfloat16),
        "bd": _pad_axis(params["bd"], 1, Ap).astype(jnp.float32),
    }
    meta = dict(D=D, Dp=Dp, E=E, Ep=Ep, Hd=Hd, Hp=Hp, A=A, Ap=Ap)
    return prepped, meta


# ----------------------------------------------------------------------------
# Per-call wrapper: prepare activations, launch the single fused kernel, slice back.
# ----------------------------------------------------------------------------
def vqa_forward(image_nchw, q_embed, question_length, prepped, meta):
    B = image_nchw.shape[0]
    T = q_embed.shape[1]
    D, Dp, E, Ep = meta["D"], meta["Dp"], meta["E"], meta["Ep"]
    Hp, A, Ap = meta["Hp"], meta["A"], meta["Ap"]
    Bp = _ceil_to(B, _SUB)

    assert math.prod(image_nchw.shape[1:]) == D
    assert q_embed.shape[2] == E

    # Per-call activation prep only (a few KB); parameters were prepped once.
    x_flat = image_nchw.reshape(B, D)
    x_flat = _pad_axis(_pad_axis(x_flat, 0, Bp), 1, Dp).astype(jnp.bfloat16)
    q_tm = _pad_axis(_pad_axis(q_embed, 0, Bp), 2, Ep)                  # [Bp, T, Ep]
    q_tm = jnp.transpose(q_tm, (1, 0, 2)).reshape(T * Bp, Ep)           # time-major
    q_tm = q_tm.astype(jnp.bfloat16)
    len2d = _pad_axis(question_length.astype(jnp.int32).reshape(B, 1), 0, Bp)

    unroll_time = T < _FORI_T
    kernel = functools.partial(_vqa_fused_kernel, T=T, unroll_time=unroll_time)

    vmem = pl.BlockSpec(memory_space=pltpu.MemorySpace.VMEM)
    hbm = pl.BlockSpec(memory_space=pl.ANY)   # wi: fetched manually inside the kernel

    scratch_shapes = [
        pltpu.VMEM((Dp, Hp), jnp.bfloat16),          # wi landing buffer
        pltpu.SemaphoreType.DMA(()),                 # wi DMA completion
        pltpu.VMEM((T * Bp, 3 * Hp), jnp.float32),   # hoisted GRU input projection
    ]

    # Byte accounting for the VMEM budget and the XLA cost estimate.
    operands = (x_flat, prepped["wi"], prepped["bi"], q_tm, len2d,
                prepped["wx"], prepped["bx"], prepped["wh"], prepped["bh"],
                prepped["wd"], prepped["bd"])
    in_bytes = sum(int(a.size) * jnp.dtype(a.dtype).itemsize for a in operands)
    out_bytes = _nbytes((Bp, Ap), jnp.float32)
    scratch_bytes = (_nbytes((Dp, Hp), jnp.bfloat16)
                     + _nbytes((T * Bp, 3 * Hp), jnp.float32))
    # Explicit scoped-VMEM limit: v5e's default is only 16 MiB; leave 2x headroom,
    # never request above v7x's 64 MiB physical VMEM.
    vmem_limit = int(min(max(2 * (in_bytes + out_bytes + scratch_bytes) + (4 << 20),
                             16 << 20), 64 << 20))

    flops = (2 * Bp * Dp * Hp                      # image projection
             + 2 * (T * Bp) * Ep * (3 * Hp)        # hoisted GRU input projection
             + T * 2 * Bp * Hp * (3 * Hp)          # recurrent h @ wh
             + 2 * Bp * Hp * Ap)                   # decoder
    transcendentals = Bp * Hp + T * 3 * Bp * Hp    # tanh(img) + per-step gates

    logits_padded = pl.pallas_call(
        kernel,
        out_shape=jax.ShapeDtypeStruct((Bp, Ap), jnp.float32),
        in_specs=[vmem, hbm, vmem, vmem, vmem, vmem, vmem, vmem, vmem, vmem, vmem],
        out_specs=vmem,
        scratch_shapes=scratch_shapes,
        compiler_params=pltpu.CompilerParams(vmem_limit_bytes=vmem_limit),
        cost_estimate=pl.CostEstimate(flops=int(flops),
                                      transcendentals=int(transcendentals),
                                      bytes_accessed=int(in_bytes + out_bytes)),
    )(*operands)

    return logits_padded[:B, :A]


# ----------------------------------------------------------------------------
# Example / self-check
# ----------------------------------------------------------------------------
if __name__ == "__main__":
    B, C, Himg, Wimg = 2, 4, 16, 16        # image: NCHW
    E, Hd, A = 32, 32, 16                  # embed dim, hidden dim, num answers

    key = jax.random.PRNGKey(0)
    (k_img, k_q1, k_q2, k_wi, k_bi, k_wx, k_bx,
     k_wh, k_bh, k_wd, k_bd) = jax.random.split(key, 11)

    D = C * Himg * Wimg
    params = {
        # image embedding: Linear(D -> Hd) + tanh
        "wi": jax.random.normal(k_wi, (D, Hd), dtype=jnp.float32) * 0.02,
        "bi": jax.random.normal(k_bi, (1, Hd), dtype=jnp.float32) * 0.05,
        # GRU: gates ordered [r | z | n]
        "wx": jax.random.normal(k_wx, (E, 3 * Hd), dtype=jnp.float32) * 0.1,
        "bx": jax.random.normal(k_bx, (1, 3 * Hd), dtype=jnp.float32) * 0.05,
        "wh": jax.random.normal(k_wh, (Hd, 3 * Hd), dtype=jnp.float32) * 0.1,
        "bh": jax.random.normal(k_bh, (1, 3 * Hd), dtype=jnp.float32) * 0.05,
        # decoder: Linear(Hd -> A)
        "wd": jax.random.normal(k_wd, (Hd, A), dtype=jnp.float32) * 0.1,
        "bd": jax.random.normal(k_bd, (1, A), dtype=jnp.float32) * 0.05,
    }

    # One-time parameter relayout (amortized across forward calls).
    prepped, meta = prepare_vqa_params(params)

    # Pure-JAX f32 reference (same semantics); bf16 MXU operands in the kernel give
    # small, documented numeric drift.
    def ref_forward(img, q, q_len, p):
        Bq, Tq = q.shape[0], q.shape[1]
        i_emb = jnp.tanh(img.reshape(Bq, -1) @ p["wi"] + p["bi"])
        h = jnp.zeros((Bq, Hd), jnp.float32)
        for t in range(Tq):
            gx = q[:, t, :] @ p["wx"] + p["bx"]
            gh = h @ p["wh"] + p["bh"]
            r = jax.nn.sigmoid(gx[:, :Hd] + gh[:, :Hd])
            z = jax.nn.sigmoid(gx[:, Hd:2 * Hd] + gh[:, Hd:2 * Hd])
            n = jnp.tanh(gx[:, 2 * Hd:] + r * gh[:, 2 * Hd:])
            h_new = (1.0 - z) * n + z * h
            h = jnp.where((t < q_len)[:, None], h_new, h)
        return (i_emb * h) @ p["wd"] + p["bd"]

    image = jax.random.normal(k_img, (B, C, Himg, Wimg), dtype=jnp.float32)

    ok = True
    # T=8 exercises the statically-unrolled time loop; T=16 exercises the
    # lax.fori_loop path with aligned dynamic pl.ds reads from VMEM scratch.
    for T, kq in ((8, k_q1), (16, k_q2)):
        q_embed = jax.random.normal(kq, (B, T, E), dtype=jnp.float32)
        q_len = jnp.array([T, T - 3], dtype=jnp.int32)
        out = jax.block_until_ready(
            vqa_forward(image, q_embed, q_len, prepped, meta))
        ref = ref_forward(image, q_embed, q_len, params)
        ok &= (out.shape == (B, A))
        ok &= bool(jnp.all(jnp.isfinite(out)))
        ok &= bool(jnp.allclose(out, ref, atol=5e-2, rtol=5e-2))

    assert ok
    print("KERNEL_OK")
</pallas_src>

<mosaic_0001>
module attributes {stable_mosaic.version = 11 : i64} {
  func.func @_vqa_fused_kernel(%arg0: memref<8x1024xbf16, #tpu.memory_space<vmem>>, %arg1: memref<1024x128xbf16, #tpu.memory_space<any>>, %arg2: memref<1x128xf32, #tpu.memory_space<vmem>>, %arg3: memref<64x128xbf16, #tpu.memory_space<vmem>>, %arg4: memref<8x1xi32, #tpu.memory_space<vmem>>, %arg5: memref<128x384xbf16, #tpu.memory_space<vmem>>, %arg6: memref<1x384xf32, #tpu.memory_space<vmem>>, %arg7: memref<128x384xbf16, #tpu.memory_space<vmem>>, %arg8: memref<1x384xf32, #tpu.memory_space<vmem>>, %arg9: memref<128x128xbf16, #tpu.memory_space<vmem>>, %arg10: memref<1x128xf32, #tpu.memory_space<vmem>>, %arg11: memref<8x128xf32, #tpu.memory_space<vmem>>, %arg12: memref<1024x128xbf16, #tpu.memory_space<vmem>>, %arg13: memref<!tpu.dma_semaphore, #tpu.memory_space<semaphore_mem>>, %arg14: memref<64x384xf32, #tpu.memory_space<vmem>>) attributes {dimension_semantics = [], scalar_prefetch = 0 : i64, scratch_operands = 3 : i64, tpu.core_type = #tpu.core_type<tc>} {
    tpu.enqueue_dma source(%arg1 : memref<1024x128xbf16, #tpu.memory_space<any>>) target(%arg12 : memref<1024x128xbf16, #tpu.memory_space<vmem>>) target_semaphore(%arg13 : memref<!tpu.dma_semaphore, #tpu.memory_space<semaphore_mem>>)
    %c0 = arith.constant 0 : index
    %c0_0 = arith.constant 0 : index
    %0 = vector.load %arg3[%c0, %c0_0] : memref<64x128xbf16, #tpu.memory_space<vmem>>, vector<64x128xbf16>
    %c0_1 = arith.constant 0 : index
    %c0_2 = arith.constant 0 : index
    %1 = vector.load %arg5[%c0_1, %c0_2] : memref<128x384xbf16, #tpu.memory_space<vmem>>, vector<128x384xbf16>
    %cst = arith.constant dense<0.000000e+00> : vector<64x384xf32>
    %2 = tpu.matmul %0, %1, %cst {dimension_numbers = #tpu.dot_dimension_numbers<[1], [0], [0], [1], [0, 0, 1, 1], [], []>} : vector<64x128xbf16>, vector<128x384xbf16>, vector<64x384xf32> -> vector<64x384xf32>
    %c0_3 = arith.constant 0 : index
    %c0_4 = arith.constant 0 : index
    %3 = vector.load %arg6[%c0_3, %c0_4] : memref<1x384xf32, #tpu.memory_space<vmem>>, vector<1x384xf32>
    %4 = vector.broadcast %3 : vector<1x384xf32> to vector<64x384xf32>
    %5 = arith.addf %2, %4 : vector<64x384xf32>
    %c0_5 = arith.constant 0 : index
    %c0_6 = arith.constant 0 : index
    %6 = vector.load %arg14[%c0_5, %c0_6] : memref<64x384xf32, #tpu.memory_space<vmem>>, vector<64x384xf32>
    tpu.vector_store %arg14[%c0_5, %c0_6], %5 {strides = array<i32>} : memref<64x384xf32, #tpu.memory_space<vmem>>, vector<64x384xf32>,
    %c0_7 = arith.constant 0 : index
    %c0_8 = arith.constant 0 : index
    %7 = vector.load %arg4[%c0_7, %c0_8] : memref<8x1xi32, #tpu.memory_space<vmem>>, vector<8x1xi32>
    %8 = vector.shape_cast %7 : vector<8x1xi32> to vector<8x1xi32>
    %9 = vector.broadcast %8 : vector<8x1xi32> to vector<8x128xi32>
    %cst_9 = arith.constant 0.000000e+00 : f32
    %10 = vector.broadcast %cst_9 : f32 to vector<8x128xf32>
    %c0_10 = arith.constant 0 : index
    %c0_11 = arith.constant 0 : index
    %11 = vector.load %arg14[%c0_10, %c0_11] : memref<64x384xf32, #tpu.memory_space<vmem>>, vector<8x384xf32>
    %12 = arith.truncf %10 : vector<8x128xf32> to vector<8x128xbf16>
    %c0_12 = arith.constant 0 : index
    %c0_13 = arith.constant 0 : index
    %13 = vector.load %arg7[%c0_12, %c0_13] : memref<128x384xbf16, #tpu.memory_space<vmem>>, vector<128x384xbf16>
    %cst_14 = arith.constant dense<0.000000e+00> : vector<8x384xf32>
    %14 = tpu.matmul %12, %13, %cst_14 {dimension_numbers = #tpu.dot_dimension_numbers<[1], [0], [0], [1], [0, 0, 1, 1], [], []>} : vector<8x128xbf16>, vector<128x384xbf16>, vector<8x384xf32> -> vector<8x384xf32>
    %c0_15 = arith.constant 0 : index
    %c0_16 = arith.constant 0 : index
    %15 = vector.load %arg8[%c0_15, %c0_16] : memref<1x384xf32, #tpu.memory_space<vmem>>, vector<1x384xf32>
    %16 = vector.broadcast %15 : vector<1x384xf32> to vector<8x384xf32>
    %17 = arith.addf %14, %16 : vector<8x384xf32>
    %18 = vector.extract_strided_slice %11 {offsets = [0, 0], sizes = [8, 128], strides = [1, 1]} : vector<8x384xf32> to vector<8x128xf32>
    %19 = vector.extract_strided_slice %17 {offsets = [0, 0], sizes = [8, 128], strides = [1, 1]} : vector<8x384xf32> to vector<8x128xf32>
    %20 = arith.addf %18, %19 : vector<8x128xf32>
    %21 = arith.negf %20 : vector<8x128xf32>
    %22 = math.exp %21 : vector<8x128xf32>
    %cst_17 = arith.constant 1.000000e+00 : f32
    %23 = vector.broadcast %cst_17 : f32 to vector<8x128xf32>
    %24 = arith.addf %23, %22 : vector<8x128xf32>
    %25 = arith.divf %23, %24 : vector<8x128xf32>
    %26 = vector.extract_strided_slice %11 {offsets = [0, 128], sizes = [8, 128], strides = [1, 1]} : vector<8x384xf32> to vector<8x128xf32>
    %27 = vector.extract_strided_slice %17 {offsets = [0, 128], sizes = [8, 128], strides = [1, 1]} : vector<8x384xf32> to vector<8x128xf32>
    %28 = arith.addf %26, %27 : vector<8x128xf32>
    %29 = arith.negf %28 : vector<8x128xf32>
    %30 = math.exp %29 : vector<8x128xf32>
    %cst_18 = arith.constant 1.000000e+00 : f32
    %31 = vector.broadcast %cst_18 : f32 to vector<8x128xf32>
    %32 = arith.addf %31, %30 : vector<8x128xf32>
    %33 = arith.divf %31, %32 : vector<8x128xf32>
    %34 = vector.extract_strided_slice %11 {offsets = [0, 256], sizes = [8, 128], strides = [1, 1]} : vector<8x384xf32> to vector<8x128xf32>
    %35 = vector.extract_strided_slice %17 {offsets = [0, 256], sizes = [8, 128], strides = [1, 1]} : vector<8x384xf32> to vector<8x128xf32>
    %36 = arith.mulf %25, %35 : vector<8x128xf32>
    %37 = arith.addf %34, %36 : vector<8x128xf32>
    %38 = math.tanh %37 : vector<8x128xf32>
    %cst_19 = arith.constant 1.000000e+00 : f32
    %39 = vector.broadcast %cst_19 : f32 to vector<8x128xf32>
    %40 = arith.subf %39, %33 : vector<8x128xf32>
    %41 = arith.mulf %40, %38 : vector<8x128xf32>
    %42 = arith.mulf %33, %10 : vector<8x128xf32>
    %43 = arith.addf %41, %42 : vector<8x128xf32>
    %c0_i32 = arith.constant 0 : i32
    %44 = vector.broadcast %c0_i32 : i32 to vector<8x128xi32>
    %45 = arith.cmpi sgt, %9, %44 : vector<8x128xi32>
    %46 = arith.select %45, %43, %10 : vector<8x128xi1>, vector<8x128xf32>
    %c8 = arith.constant 8 : index
    %c0_20 = arith.constant 0 : index
    %47 = vector.load %arg14[%c8, %c0_20] : memref<64x384xf32, #tpu.memory_space<vmem>>, vector<8x384xf32>
    %48 = arith.truncf %46 : vector<8x128xf32> to vector<8x128xbf16>
    %c0_21 = arith.constant 0 : index
    %c0_22 = arith.constant 0 : index
    %49 = vector.load %arg7[%c0_21, %c0_22] : memref<128x384xbf16, #tpu.memory_space<vmem>>, vector<128x384xbf16>
    %cst_23 = arith.constant dense<0.000000e+00> : vector<8x384xf32>
    %50 = tpu.matmul %48, %49, %cst_23 {dimension_numbers = #tpu.dot_dimension_numbers<[1], [0], [0], [1], [0, 0, 1, 1], [], []>} : vector<8x128xbf16>, vector<128x384xbf16>, vector<8x384xf32> -> vector<8x384xf32>
    %c0_24 = arith.constant 0 : index
    %c0_25 = arith.constant 0 : index
    %51 = vector.load %arg8[%c0_24, %c0_25] : memref<1x384xf32, #tpu.memory_space<vmem>>, vector<1x384xf32>
    %52 = vector.broadcast %51 : vector<1x384xf32> to vector<8x384xf32>
    %53 = arith.addf %50, %52 : vector<8x384xf32>
    %54 = vector.extract_strided_slice %47 {offsets = [0, 0], sizes = [8, 128], strides = [1, 1]} : vector<8x384xf32> to vector<8x128xf32>
    %55 = vector.extract_strided_slice %53 {offsets = [0, 0], sizes = [8, 128], strides = [1, 1]} : vector<8x384xf32> to vector<8x128xf32>
    %56 = arith.addf %54, %55 : vector<8x128xf32>
    %57 = arith.negf %56 : vector<8x128xf32>
    %58 = math.exp %57 : vector<8x128xf32>
    %cst_26 = arith.constant 1.000000e+00 : f32
    %59 = vector.broadcast %cst_26 : f32 to vector<8x128xf32>
    %60 = arith.addf %59, %58 : vector<8x128xf32>
    %61 = arith.divf %59, %60 : vector<8x128xf32>
    %62 = vector.extract_strided_slice %47 {offsets = [0, 128], sizes = [8, 128], strides = [1, 1]} : vector<8x384xf32> to vector<8x128xf32>
    %63 = vector.extract_strided_slice %53 {offsets = [0, 128], sizes = [8, 128], strides = [1, 1]} : vector<8x384xf32> to vector<8x128xf32>
    %64 = arith.addf %62, %63 : vector<8x128xf32>
    %65 = arith.negf %64 : vector<8x128xf32>
    %66 = math.exp %65 : vector<8x128xf32>
    %cst_27 = arith.constant 1.000000e+00 : f32
    %67 = vector.broadcast %cst_27 : f32 to vector<8x128xf32>
    %68 = arith.addf %67, %66 : vector<8x128xf32>
    %69 = arith.divf %67, %68 : vector<8x128xf32>
    %70 = vector.extract_strided_slice %47 {offsets = [0, 256], sizes = [8, 128], strides = [1, 1]} : vector<8x384xf32> to vector<8x128xf32>
    %71 = vector.extract_strided_slice %53 {offsets = [0, 256], sizes = [8, 128], strides = [1, 1]} : vector<8x384xf32> to vector<8x128xf32>
    %72 = arith.mulf %61, %71 : vector<8x128xf32>
    %73 = arith.addf %70, %72 : vector<8x128xf32>
    %74 = math.tanh %73 : vector<8x128xf32>
    %cst_28 = arith.constant 1.000000e+00 : f32
    %75 = vector.broadcast %cst_28 : f32 to vector<8x128xf32>
    %76 = arith.subf %75, %69 : vector<8x128xf32>
    %77 = arith.mulf %76, %74 : vector<8x128xf32>
    %78 = arith.mulf %69, %46 : vector<8x128xf32>
    %79 = arith.addf %77, %78 : vector<8x128xf32>
    %c1_i32 = arith.constant 1 : i32
    %80 = vector.broadcast %c1_i32 : i32 to vector<8x128xi32>
    %81 = arith.cmpi sgt, %9, %80 : vector<8x128xi32>
    %82 = arith.select %81, %79, %46 : vector<8x128xi1>, vector<8x128xf32>
    %c16 = arith.constant 16 : index
    %c0_29 = arith.constant 0 : index
    %83 = vector.load %arg14[%c16, %c0_29] : memref<64x384xf32, #tpu.memory_space<vmem>>, vector<8x384xf32>
    %84 = arith.truncf %82 : vector<8x128xf32> to vector<8x128xbf16>
    %c0_30 = arith.constant 0 : index
    %c0_31 = arith.constant 0 : index
    %85 = vector.load %arg7[%c0_30, %c0_31] : memref<128x384xbf16, #tpu.memory_space<vmem>>, vector<128x384xbf16>
    %cst_32 = arith.constant dense<0.000000e+00> : vector<8x384xf32>
    %86 = tpu.matmul %84, %85, %cst_32 {dimension_numbers = #tpu.dot_dimension_numbers<[1], [0], [0], [1], [0, 0, 1, 1], [], []>} : vector<8x128xbf16>, vector<128x384xbf16>, vector<8x384xf32> -> vector<8x384xf32>
    %c0_33 = arith.constant 0 : index
    %c0_34 = arith.constant 0 : index
    %87 = vector.load %arg8[%c0_33, %c0_34] : memref<1x384xf32, #tpu.memory_space<vmem>>, vector<1x384xf32>
    %88 = vector.broadcast %87 : vector<1x384xf32> to vector<8x384xf32>
    %89 = arith.addf %86, %88 : vector<8x384xf32>
    %90 = vector.extract_strided_slice %83 {offsets = [0, 0], sizes = [8, 128], strides = [1, 1]} : vector<8x384xf32> to vector<8x128xf32>
    %91 = vector.extract_strided_slice %89 {offsets = [0, 0], sizes = [8, 128], strides = [1, 1]} : vector<8x384xf32> to vector<8x128xf32>
    %92 = arith.addf %90, %91 : vector<8x128xf32>
    %93 = arith.negf %92 : vector<8x128xf32>
    %94 = math.exp %93 : vector<8x128xf32>
    %cst_35 = arith.constant 1.000000e+00 : f32
    %95 = vector.broadcast %cst_35 : f32 to vector<8x128xf32>
    %96 = arith.addf %95, %94 : vector<8x128xf32>
    %97 = arith.divf %95, %96 : vector<8x128xf32>
    %98 = vector.extract_strided_slice %83 {offsets = [0, 128], sizes = [8, 128], strides = [1, 1]} : vector<8x384xf32> to vector<8x128xf32>
    %99 = vector.extract_strided_slice %89 {offsets = [0, 128], sizes = [8, 128], strides = [1, 1]} : vector<8x384xf32> to vector<8x128xf32>
    %100 = arith.addf %98, %99 : vector<8x128xf32>
    %101 = arith.negf %100 : vector<8x128xf32>
    %102 = math.exp %101 : vector<8x128xf32>
    %cst_36 = arith.constant 1.000000e+00 : f32
    %103 = vector.broadcast %cst_36 : f32 to vector<8x128xf32>
    %104 = arith.addf %103, %102 : vector<8x128xf32>
    %105 = arith.divf %103, %104 : vector<8x128xf32>
    %106 = vector.extract_strided_slice %83 {offsets = [0, 256], sizes = [8, 128], strides = [1, 1]} : vector<8x384xf32> to vector<8x128xf32>
    %107 = vector.extract_strided_slice %89 {offsets = [0, 256], sizes = [8, 128], strides = [1, 1]} : vector<8x384xf32> to vector<8x128xf32>
    %108 = arith.mulf %97, %107 : vector<8x128xf32>
    %109 = arith.addf %106, %108 : vector<8x128xf32>
    %110 = math.tanh %109 : vector<8x128xf32>
    %cst_37 = arith.constant 1.000000e+00 : f32
    %111 = vector.broadcast %cst_37 : f32 to vector<8x128xf32>
    %112 = arith.subf %111, %105 : vector<8x128xf32>
    %113 = arith.mulf %112, %110 : vector<8x128xf32>
    %114 = arith.mulf %105, %82 : vector<8x128xf32>
    %115 = arith.addf %113, %114 : vector<8x128xf32>
    %c2_i32 = arith.constant 2 : i32
    %116 = vector.broadcast %c2_i32 : i32 to vector<8x128xi32>
    %117 = arith.cmpi sgt, %9, %116 : vector<8x128xi32>
    %118 = arith.select %117, %115, %82 : vector<8x128xi1>, vector<8x128xf32>
    %c24 = arith.constant 24 : index
    %c0_38 = arith.constant 0 : index
    %119 = vector.load %arg14[%c24, %c0_38] : memref<64x384xf32, #tpu.memory_space<vmem>>, vector<8x384xf32>
    %120 = arith.truncf %118 : vector<8x128xf32> to vector<8x128xbf16>
    %c0_39 = arith.constant 0 : index
    %c0_40 = arith.constant 0 : index
    %121 = vector.load %arg7[%c0_39, %c0_40] : memref<128x384xbf16, #tpu.memory_space<vmem>>, vector<128x384xbf16>
    %cst_41 = arith.constant dense<0.000000e+00> : vector<8x384xf32>
    %122 = tpu.matmul %120, %121, %cst_41 {dimension_numbers = #tpu.dot_dimension_numbers<[1], [0], [0], [1], [0, 0, 1, 1], [], []>} : vector<8x128xbf16>, vector<128x384xbf16>, vector<8x384xf32> -> vector<8x384xf32>
    %c0_42 = arith.constant 0 : index
    %c0_43 = arith.constant 0 : index
    %123 = vector.load %arg8[%c0_42, %c0_43] : memref<1x384xf32, #tpu.memory_space<vmem>>, vector<1x384xf32>
    %124 = vector.broadcast %123 : vector<1x384xf32> to vector<8x384xf32>
    %125 = arith.addf %122, %124 : vector<8x384xf32>
    %126 = vector.extract_strided_slice %119 {offsets = [0, 0], sizes = [8, 128], strides = [1, 1]} : vector<8x384xf32> to vector<8x128xf32>
    %127 = vector.extract_strided_slice %125 {offsets = [0, 0], sizes = [8, 128], strides = [1, 1]} : vector<8x384xf32> to vector<8x128xf32>
    %128 = arith.addf %126, %127 : vector<8x128xf32>
    %129 = arith.negf %128 : vector<8x128xf32>
    %130 = math.exp %129 : vector<8x128xf32>
    %cst_44 = arith.constant 1.000000e+00 : f32
    %131 = vector.broadcast %cst_44 : f32 to vector<8x128xf32>
    %132 = arith.addf %131, %130 : vector<8x128xf32>
    %133 = arith.divf %131, %132 : vector<8x128xf32>
    %134 = vector.extract_strided_slice %119 {offsets = [0, 128], sizes = [8, 128], strides = [1, 1]} : vector<8x384xf32> to vector<8x128xf32>
    %135 = vector.extract_strided_slice %125 {offsets = [0, 128], sizes = [8, 128], strides = [1, 1]} : vector<8x384xf32> to vector<8x128xf32>
    %136 = arith.addf %134, %135 : vector<8x128xf32>
    %137 = arith.negf %136 : vector<8x128xf32>
    %138 = math.exp %137 : vector<8x128xf32>
    %cst_45 = arith.constant 1.000000e+00 : f32
    %139 = vector.broadcast %cst_45 : f32 to vector<8x128xf32>
    %140 = arith.addf %139, %138 : vector<8x128xf32>
    %141 = arith.divf %139, %140 : vector<8x128xf32>
    %142 = vector.extract_strided_slice %119 {offsets = [0, 256], sizes = [8, 128], strides = [1, 1]} : vector<8x384xf32> to vector<8x128xf32>
    %143 = vector.extract_strided_slice %125 {offsets = [0, 256], sizes = [8, 128], strides = [1, 1]} : vector<8x384xf32> to vector<8x128xf32>
    %144 = arith.mulf %133, %143 : vector<8x128xf32>
    %145 = arith.addf %142, %144 : vector<8x128xf32>
    %146 = math.tanh %145 : vector<8x128xf32>
    %cst_46 = arith.constant 1.000000e+00 : f32
    %147 = vector.broadcast %cst_46 : f32 to vector<8x128xf32>
    %148 = arith.subf %147, %141 : vector<8x128xf32>
    %149 = arith.mulf %148, %146 : vector<8x128xf32>
    %150 = arith.mulf %141, %118 : vector<8x128xf32>
    %151 = arith.addf %149, %150 : vector<8x128xf32>
    %c3_i32 = arith.constant 3 : i32
    %152 = vector.broadcast %c3_i32 : i32 to vector<8x128xi32>
    %153 = arith.cmpi sgt, %9, %152 : vector<8x128xi32>
    %154 = arith.select %153, %151, %118 : vector<8x128xi1>, vector<8x128xf32>
    %c32 = arith.constant 32 : index
    %c0_47 = arith.constant 0 : index
    %155 = vector.load %arg14[%c32, %c0_47] : memref<64x384xf32, #tpu.memory_space<vmem>>, vector<8x384xf32>
    %156 = arith.truncf %154 : vector<8x128xf32> to vector<8x128xbf16>
    %c0_48 = arith.constant 0 : index
    %c0_49 = arith.constant 0 : index
    %157 = vector.load %arg7[%c0_48, %c0_49] : memref<128x384xbf16, #tpu.memory_space<vmem>>, vector<128x384xbf16>
    %cst_50 = arith.constant dense<0.000000e+00> : vector<8x384xf32>
    %158 = tpu.matmul %156, %157, %cst_50 {dimension_numbers = #tpu.dot_dimension_numbers<[1], [0], [0], [1], [0, 0, 1, 1], [], []>} : vector<8x128xbf16>, vector<128x384xbf16>, vector<8x384xf32> -> vector<8x384xf32>
    %c0_51 = arith.constant 0 : index
    %c0_52 = arith.constant 0 : index
    %159 = vector.load %arg8[%c0_51, %c0_52] : memref<1x384xf32, #tpu.memory_space<vmem>>, vector<1x384xf32>
    %160 = vector.broadcast %159 : vector<1x384xf32> to vector<8x384xf32>
    %161 = arith.addf %158, %160 : vector<8x384xf32>
    %162 = vector.extract_strided_slice %155 {offsets = [0, 0], sizes = [8, 128], strides = [1, 1]} : vector<8x384xf32> to vector<8x128xf32>
    %163 = vector.extract_strided_slice %161 {offsets = [0, 0], sizes = [8, 128], strides = [1, 1]} : vector<8x384xf32> to vector<8x128xf32>
    %164 = arith.addf %162, %163 : vector<8x128xf32>
    %165 = arith.negf %164 : vector<8x128xf32>
    %166 = math.exp %165 : vector<8x128xf32>
    %cst_53 = arith.constant 1.000000e+00 : f32
    %167 = vector.broadcast %cst_53 : f32 to vector<8x128xf32>
    %168 = arith.addf %167, %166 : vector<8x128xf32>
    %169 = arith.divf %167, %168 : vector<8x128xf32>
    %170 = vector.extract_strided_slice %155 {offsets = [0, 128], sizes = [8, 128], strides = [1, 1]} : vector<8x384xf32> to vector<8x128xf32>
    %171 = vector.extract_strided_slice %161 {offsets = [0, 128], sizes = [8, 128], strides = [1, 1]} : vector<8x384xf32> to vector<8x128xf32>
    %172 = arith.addf %170, %171 : vector<8x128xf32>
    %173 = arith.negf %172 : vector<8x128xf32>
    %174 = math.exp %173 : vector<8x128xf32>
    %cst_54 = arith.constant 1.000000e+00 : f32
    %175 = vector.broadcast %cst_54 : f32 to vector<8x128xf32>
    %176 = arith.addf %175, %174 : vector<8x128xf32>
    %177 = arith.divf %175, %176 : vector<8x128xf32>
    %178 = vector.extract_strided_slice %155 {offsets = [0, 256], sizes = [8, 128], strides = [1, 1]} : vector<8x384xf32> to vector<8x128xf32>
    %179 = vector.extract_strided_slice %161 {offsets = [0, 256], sizes = [8, 128], strides = [1, 1]} : vector<8x384xf32> to vector<8x128xf32>
    %180 = arith.mulf %169, %179 : vector<8x128xf32>
    %181 = arith.addf %178, %180 : vector<8x128xf32>
    %182 = math.tanh %181 : vector<8x128xf32>
    %cst_55 = arith.constant 1.000000e+00 : f32
    %183 = vector.broadcast %cst_55 : f32 to vector<8x128xf32>
    %184 = arith.subf %183, %177 : vector<8x128xf32>
    %185 = arith.mulf %184, %182 : vector<8x128xf32>
    %186 = arith.mulf %177, %154 : vector<8x128xf32>
    %187 = arith.addf %185, %186 : vector<8x128xf32>
    %c4_i32 = arith.constant 4 : i32
    %188 = vector.broadcast %c4_i32 : i32 to vector<8x128xi32>
    %189 = arith.cmpi sgt, %9, %188 : vector<8x128xi32>
    %190 = arith.select %189, %187, %154 : vector<8x128xi1>, vector<8x128xf32>
    %c40 = arith.constant 40 : index
    %c0_56 = arith.constant 0 : index
    %191 = vector.load %arg14[%c40, %c0_56] : memref<64x384xf32, #tpu.memory_space<vmem>>, vector<8x384xf32>
    %192 = arith.truncf %190 : vector<8x128xf32> to vector<8x128xbf16>
    %c0_57 = arith.constant 0 : index
    %c0_58 = arith.constant 0 : index
    %193 = vector.load %arg7[%c0_57, %c0_58] : memref<128x384xbf16, #tpu.memory_space<vmem>>, vector<128x384xbf16>
    %cst_59 = arith.constant dense<0.000000e+00> : vector<8x384xf32>
    %194 = tpu.matmul %192, %193, %cst_59 {dimension_numbers = #tpu.dot_dimension_numbers<[1], [0], [0], [1], [0, 0, 1, 1], [], []>} : vector<8x128xbf16>, vector<128x384xbf16>, vector<8x384xf32> -> vector<8x384xf32>
    %c0_60 = arith.constant 0 : index
    %c0_61 = arith.constant 0 : index
    %195 = vector.load %arg8[%c0_60, %c0_61] : memref<1x384xf32, #tpu.memory_space<vmem>>, vector<1x384xf32>
    %196 = vector.broadcast %195 : vector<1x384xf32> to vector<8x384xf32>
    %197 = arith.addf %194, %196 : vector<8x384xf32>
    %198 = vector.extract_strided_slice %191 {offsets = [0, 0], sizes = [8, 128], strides = [1, 1]} : vector<8x384xf32> to vector<8x128xf32>
    %199 = vector.extract_strided_slice %197 {offsets = [0, 0], sizes = [8, 128], strides = [1, 1]} : vector<8x384xf32> to vector<8x128xf32>
    %200 = arith.addf %198, %199 : vector<8x128xf32>
    %201 = arith.negf %200 : vector<8x128xf32>
    %202 = math.exp %201 : vector<8x128xf32>
    %cst_62 = arith.constant 1.000000e+00 : f32
    %203 = vector.broadcast %cst_62 : f32 to vector<8x128xf32>
    %204 = arith.addf %203, %202 : vector<8x128xf32>
    %205 = arith.divf %203, %204 : vector<8x128xf32>
    %206 = vector.extract_strided_slice %191 {offsets = [0, 128], sizes = [8, 128], strides = [1, 1]} : vector<8x384xf32> to vector<8x128xf32>
    %207 = vector.extract_strided_slice %197 {offsets = [0, 128], sizes = [8, 128], strides = [1, 1]} : vector<8x384xf32> to vector<8x128xf32>
    %208 = arith.addf %206, %207 : vector<8x128xf32>
    %209 = arith.negf %208 : vector<8x128xf32>
    %210 = math.exp %209 : vector<8x128xf32>
    %cst_63 = arith.constant 1.000000e+00 : f32
    %211 = vector.broadcast %cst_63 : f32 to vector<8x128xf32>
    %212 = arith.addf %211, %210 : vector<8x128xf32>
    %213 = arith.divf %211, %212 : vector<8x128xf32>
    %214 = vector.extract_strided_slice %191 {offsets = [0, 256], sizes = [8, 128], strides = [1, 1]} : vector<8x384xf32> to vector<8x128xf32>
    %215 = vector.extract_strided_slice %197 {offsets = [0, 256], sizes = [8, 128], strides = [1, 1]} : vector<8x384xf32> to vector<8x128xf32>
    %216 = arith.mulf %205, %215 : vector<8x128xf32>
    %217 = arith.addf %214, %216 : vector<8x128xf32>
    %218 = math.tanh %217 : vector<8x128xf32>
    %cst_64 = arith.constant 1.000000e+00 : f32
    %219 = vector.broadcast %cst_64 : f32 to vector<8x128xf32>
    %220 = arith.subf %219, %213 : vector<8x128xf32>
    %221 = arith.mulf %220, %218 : vector<8x128xf32>
    %222 = arith.mulf %213, %190 : vector<8x128xf32>
    %223 = arith.addf %221, %222 : vector<8x128xf32>
    %c5_i32 = arith.constant 5 : i32
    %224 = vector.broadcast %c5_i32 : i32 to vector<8x128xi32>
    %225 = arith.cmpi sgt, %9, %224 : vector<8x128xi32>
    %226 = arith.select %225, %223, %190 : vector<8x128xi1>, vector<8x128xf32>
    %c48 = arith.constant 48 : index
    %c0_65 = arith.constant 0 : index
    %227 = vector.load %arg14[%c48, %c0_65] : memref<64x384xf32, #tpu.memory_space<vmem>>, vector<8x384xf32>
    %228 = arith.truncf %226 : vector<8x128xf32> to vector<8x128xbf16>
    %c0_66 = arith.constant 0 : index
    %c0_67 = arith.constant 0 : index
    %229 = vector.load %arg7[%c0_66, %c0_67] : memref<128x384xbf16, #tpu.memory_space<vmem>>, vector<128x384xbf16>
    %cst_68 = arith.constant dense<0.000000e+00> : vector<8x384xf32>
    %230 = tpu.matmul %228, %229, %cst_68 {dimension_numbers = #tpu.dot_dimension_numbers<[1], [0], [0], [1], [0, 0, 1, 1], [], []>} : vector<8x128xbf16>, vector<128x384xbf16>, vector<8x384xf32> -> vector<8x384xf32>
    %c0_69 = arith.constant 0 : index
    %c0_70 = arith.constant 0 : index
    %231 = vector.load %arg8[%c0_69, %c0_70] : memref<1x384xf32, #tpu.memory_space<vmem>>, vector<1x384xf32>
    %232 = vector.broadcast %231 : vector<1x384xf32> to vector<8x384xf32>
    %233 = arith.addf %230, %232 : vector<8x384xf32>
    %234 = vector.extract_strided_slice %227 {offsets = [0, 0], sizes = [8, 128], strides = [1, 1]} : vector<8x384xf32> to vector<8x128xf32>
    %235 = vector.extract_strided_slice %233 {offsets = [0, 0], sizes = [8, 128], strides = [1, 1]} : vector<8x384xf32> to vector<8x128xf32>
    %236 = arith.addf %234, %235 : vector<8x128xf32>
    %237 = arith.negf %236 : vector<8x128xf32>
    %238 = math.exp %237 : vector<8x128xf32>
    %cst_71 = arith.constant 1.000000e+00 : f32
    %239 = vector.broadcast %cst_71 : f32 to vector<8x128xf32>
    %240 = arith.addf %239, %238 : vector<8x128xf32>
    %241 = arith.divf %239, %240 : vector<8x128xf32>
    %242 = vector.extract_strided_slice %227 {offsets = [0, 128], sizes = [8, 128], strides = [1, 1]} : vector<8x384xf32> to vector<8x128xf32>
    %243 = vector.extract_strided_slice %233 {offsets = [0, 128], sizes = [8, 128], strides = [1, 1]} : vector<8x384xf32> to vector<8x128xf32>
    %244 = arith.addf %242, %243 : vector<8x128xf32>
    %245 = arith.negf %244 : vector<8x128xf32>
    %246 = math.exp %245 : vector<8x128xf32>
    %cst_72 = arith.constant 1.000000e+00 : f32
    %247 = vector.broadcast %cst_72 : f32 to vector<8x128xf32>
    %248 = arith.addf %247, %246 : vector<8x128xf32>
    %249 = arith.divf %247, %248 : vector<8x128xf32>
    %250 = vector.extract_strided_slice %227 {offsets = [0, 256], sizes = [8, 128], strides = [1, 1]} : vector<8x384xf32> to vector<8x128xf32>
    %251 = vector.extract_strided_slice %233 {offsets = [0, 256], sizes = [8, 128], strides = [1, 1]} : vector<8x384xf32> to vector<8x128xf32>
    %252 = arith.mulf %241, %251 : vector<8x128xf32>
    %253 = arith.addf %250, %252 : vector<8x128xf32>
    %254 = math.tanh %253 : vector<8x128xf32>
    %cst_73 = arith.constant 1.000000e+00 : f32
    %255 = vector.broadcast %cst_73 : f32 to vector<8x128xf32>
    %256 = arith.subf %255, %249 : vector<8x128xf32>
    %257 = arith.mulf %256, %254 : vector<8x128xf32>
    %258 = arith.mulf %249, %226 : vector<8x128xf32>
    %259 = arith.addf %257, %258 : vector<8x128xf32>
    %c6_i32 = arith.constant 6 : i32
    %260 = vector.broadcast %c6_i32 : i32 to vector<8x128xi32>
    %261 = arith.cmpi sgt, %9, %260 : vector<8x128xi32>
    %262 = arith.select %261, %259, %226 : vector<8x128xi1>, vector<8x128xf32>
    %c56 = arith.constant 56 : index
    %c0_74 = arith.constant 0 : index
    %263 = vector.load %arg14[%c56, %c0_74] : memref<64x384xf32, #tpu.memory_space<vmem>>, vector<8x384xf32>
    %264 = arith.truncf %262 : vector<8x128xf32> to vector<8x128xbf16>
    %c0_75 = arith.constant 0 : index
    %c0_76 = arith.constant 0 : index
    %265 = vector.load %arg7[%c0_75, %c0_76] : memref<128x384xbf16, #tpu.memory_space<vmem>>, vector<128x384xbf16>
    %cst_77 = arith.constant dense<0.000000e+00> : vector<8x384xf32>
    %266 = tpu.matmul %264, %265, %cst_77 {dimension_numbers = #tpu.dot_dimension_numbers<[1], [0], [0], [1], [0, 0, 1, 1], [], []>} : vector<8x128xbf16>, vector<128x384xbf16>, vector<8x384xf32> -> vector<8x384xf32>
    %c0_78 = arith.constant 0 : index
    %c0_79 = arith.constant 0 : index
    %267 = vector.load %arg8[%c0_78, %c0_79] : memref<1x384xf32, #tpu.memory_space<vmem>>, vector<1x384xf32>
    %268 = vector.broadcast %267 : vector<1x384xf32> to vector<8x384xf32>
    %269 = arith.addf %266, %268 : vector<8x384xf32>
    %270 = vector.extract_strided_slice %263 {offsets = [0, 0], sizes = [8, 128], strides = [1, 1]} : vector<8x384xf32> to vector<8x128xf32>
    %271 = vector.extract_strided_slice %269 {offsets = [0, 0], sizes = [8, 128], strides = [1, 1]} : vector<8x384xf32> to vector<8x128xf32>
    %272 = arith.addf %270, %271 : vector<8x128xf32>
    %273 = arith.negf %272 : vector<8x128xf32>
    %274 = math.exp %273 : vector<8x128xf32>
    %cst_80 = arith.constant 1.000000e+00 : f32
    %275 = vector.broadcast %cst_80 : f32 to vector<8x128xf32>
    %276 = arith.addf %275, %274 : vector<8x128xf32>
    %277 = arith.divf %275, %276 : vector<8x128xf32>
    %278 = vector.extract_strided_slice %263 {offsets = [0, 128], sizes = [8, 128], strides = [1, 1]} : vector<8x384xf32> to vector<8x128xf32>
    %279 = vector.extract_strided_slice %269 {offsets = [0, 128], sizes = [8, 128], strides = [1, 1]} : vector<8x384xf32> to vector<8x128xf32>
    %280 = arith.addf %278, %279 : vector<8x128xf32>
    %281 = arith.negf %280 : vector<8x128xf32>
    %282 = math.exp %281 : vector<8x128xf32>
    %cst_81 = arith.constant 1.000000e+00 : f32
    %283 = vector.broadcast %cst_81 : f32 to vector<8x128xf32>
    %284 = arith.addf %283, %282 : vector<8x128xf32>
    %285 = arith.divf %283, %284 : vector<8x128xf32>
    %286 = vector.extract_strided_slice %263 {offsets = [0, 256], sizes = [8, 128], strides = [1, 1]} : vector<8x384xf32> to vector<8x128xf32>
    %287 = vector.extract_strided_slice %269 {offsets = [0, 256], sizes = [8, 128], strides = [1, 1]} : vector<8x384xf32> to vector<8x128xf32>
    %288 = arith.mulf %277, %287 : vector<8x128xf32>
    %289 = arith.addf %286, %288 : vector<8x128xf32>
    %290 = math.tanh %289 : vector<8x128xf32>
    %cst_82 = arith.constant 1.000000e+00 : f32
    %291 = vector.broadcast %cst_82 : f32 to vector<8x128xf32>
    %292 = arith.subf %291, %285 : vector<8x128xf32>
    %293 = arith.mulf %292, %290 : vector<8x128xf32>
    %294 = arith.mulf %285, %262 : vector<8x128xf32>
    %295 = arith.addf %293, %294 : vector<8x128xf32>
    %c7_i32 = arith.constant 7 : i32
    %296 = vector.broadcast %c7_i32 : i32 to vector<8x128xi32>
    %297 = arith.cmpi sgt, %9, %296 : vector<8x128xi32>
    %298 = arith.select %297, %295, %262 : vector<8x128xi1>, vector<8x128xf32>
    tpu.wait_dma2 semaphore(%arg13 : memref<!tpu.dma_semaphore, #tpu.memory_space<semaphore_mem>>) src(%arg1 : memref<1024x128xbf16, #tpu.memory_space<any>>) dst(%arg12 : memref<1024x128xbf16, #tpu.memory_space<vmem>>)
    %c0_83 = arith.constant 0 : index
    %c0_84 = arith.constant 0 : index
    %299 = vector.load %arg0[%c0_83, %c0_84] : memref<8x1024xbf16, #tpu.memory_space<vmem>>, vector<8x1024xbf16>
    %c0_85 = arith.constant 0 : index
    %c0_86 = arith.constant 0 : index
    %300 = vector.load %arg12[%c0_85, %c0_86] : memref<1024x128xbf16, #tpu.memory_space<vmem>>, vector<1024x128xbf16>
    %cst_87 = arith.constant dense<0.000000e+00> : vector<8x128xf32>
    %301 = tpu.matmul %299, %300, %cst_87 {dimension_numbers = #tpu.dot_dimension_numbers<[1], [0], [0], [1], [0, 0, 1, 1], [], []>} : vector<8x1024xbf16>, vector<1024x128xbf16>, vector<8x128xf32> -> vector<8x128xf32>
    %c0_88 = arith.constant 0 : index
    %c0_89 = arith.constant 0 : index
    %302 = vector.load %arg2[%c0_88, %c0_89] : memref<1x128xf32, #tpu.memory_space<vmem>>, vector<1x128xf32>
    %303 = vector.broadcast %302 : vector<1x128xf32> to vector<8x128xf32>
    %304 = arith.addf %301, %303 : vector<8x128xf32>
    %305 = math.tanh %304 : vector<8x128xf32>
    %306 = arith.mulf %305, %298 : vector<8x128xf32>
    %307 = arith.truncf %306 : vector<8x128xf32> to vector<8x128xbf16>
    %c0_90 = arith.constant 0 : index
    %c0_91 = arith.constant 0 : index
    %308 = vector.load %arg9[%c0_90, %c0_91] : memref<128x128xbf16, #tpu.memory_space<vmem>>, vector<128x128xbf16>
    %cst_92 = arith.constant dense<0.000000e+00> : vector<8x128xf32>
    %309 = tpu.matmul %307, %308, %cst_92 {dimension_numbers = #tpu.dot_dimension_numbers<[1], [0], [0], [1], [0, 0, 1, 1], [], []>} : vector<8x128xbf16>, vector<128x128xbf16>, vector<8x128xf32> -> vector<8x128xf32>
    %c0_93 = arith.constant 0 : index
    %c0_94 = arith.constant 0 : index
    %310 = vector.load %arg10[%c0_93, %c0_94] : memref<1x128xf32, #tpu.memory_space<vmem>>, vector<1x128xf32>
    %311 = vector.broadcast %310 : vector<1x128xf32> to vector<8x128xf32>
    %312 = arith.addf %309, %311 : vector<8x128xf32>
    %c0_95 = arith.constant 0 : index
    %c0_96 = arith.constant 0 : index
    %313 = vector.load %arg11[%c0_95, %c0_96] : memref<8x128xf32, #tpu.memory_space<vmem>>, vector<8x128xf32>
    tpu.vector_store %arg11[%c0_95, %c0_96], %312 {strides = array<i32>} : memref<8x128xf32, #tpu.memory_space<vmem>>, vector<8x128xf32>,
    return
  }
}

</mosaic_0001>

<llo_original>
// kernel: tpu_custom_call.1
$region0: #{tpu_custom_call.1}
  #allocation0 [shape = 'u32[]', space=smem, size = 0x4, offset = 0x4, fixed_abs, tag = 'smem constant byte address 0x4 - core index']
  #allocation1 [shape = 'u32[144,128]{1,0:T(1,128)}', space=vmem, size = 0x12000, scoped, tag = 'internal scratch']
  #allocation2 [shape = 'bf16[1024,128]{1,0:T(16,128)(2,1)}', space=vmem, size = 0x40000, scoped, tag = 'scratch operand']
  #allocation3 [shape = 's32[1]{0}', space=sflag, size = 0x4, scoped, tag = 'scratch operand']
  #allocation4 [shape = 'f32[64,384]{1,0:T(8,128)}', space=vmem, size = 0x18000, scoped, tag = 'scratch operand']
  #allocation15 [shape = 's32[]', space=sflag, size = 0x4, offset = 0, fixed_abs, tag = 'sflag constant byte address 0x0 - dummy sync flag']
  #allocation16 [shape = 's32[]', space=sflag, size = 0x4, offset = 0, fixed_abs, tag = 'sflag constant byte address 0x0 - dummy sync flag']
  #allocation17 [shape = 'u32[]', space=smem, size = 0x4, offset = 0x44, fixed_abs, tag = 'smem constant byte address 0x44 - assertion arg 0']
  #allocation18 [shape = 'u32[]', space=smem, size = 0x4, offset = 0x48, fixed_abs, tag = 'smem constant byte address 0x48 - assertion arg 1']
  %s0 = inlined_call_operand.hbm [shape: bf16[8,1024], index: 0, kind: input, shape index: {}]
  %s1 = inlined_call_operand.hbm [shape: bf16[1024,128], index: 1, kind: input, shape index: {}]
  %s2 = inlined_call_operand.vmem [shape: f32[1,128], index: 2, kind: input, shape index: {}]
  %s3 = inlined_call_operand.hbm [shape: bf16[64,128], index: 3, kind: input, shape index: {}]
  %s4 = inlined_call_operand.vmem [shape: s32[8,1], index: 4, kind: input, shape index: {}]
  %s5 = inlined_call_operand.hbm [shape: bf16[128,384], index: 5, kind: input, shape index: {}]
  %s6 = inlined_call_operand.vmem [shape: f32[1,384], index: 6, kind: input, shape index: {}]
  %s7 = inlined_call_operand.hbm [shape: bf16[128,384], index: 7, kind: input, shape index: {}]
  %s8 = inlined_call_operand.vmem [shape: f32[1,384], index: 8, kind: input, shape index: {}]
  %s9 = inlined_call_operand.hbm [shape: bf16[128,128], index: 9, kind: input, shape index: {}]
  %s10 = inlined_call_operand.vmem [shape: f32[1,128], index: 10, kind: input, shape index: {}]
  %s11 = inlined_call_operand.hbm [shape: f32[8,128], index: 11, kind: output, shape index: {}]
  %s12 = sld [smem:[#allocation0]]
  $region74: #{tpu_custom_call.1} parent=0
    _
  %s14 = ssub.s32 1, %s12
  %s15 = scalar_select 0, %s14, %s12
  $region1: #{tpu_custom_call.1} parent=0
    #allocation5 [shape = 'u8[16384]{0}', space=vmem, size = 0x4000, scoped, tag = 'input window, operand 0, single buffered']
    #allocation6 [shape = 's32[1]{0}', space=sflag, size = 0x4, scoped, tag = 'scoped memory for tpu_custom_call.1']
    #allocation7 [shape = 's32[1]{0}', space=sflag, size = 0x4, scoped, tag = 'scoped memory for tpu_custom_call.1']
    #allocation8 [shape = 'u8[16384]{0}', space=vmem, size = 0x4000, scoped, tag = 'input window, operand 3, single buffered']
    #allocation9 [shape = 's32[1]{0}', space=sflag, size = 0x4, scoped, tag = 'scoped memory for tpu_custom_call.1']
    #allocation10 [shape = 'u8[98304]{0}', space=vmem, size = 0x18000, scoped, tag = 'input window, operand 5, single buffered']
    #allocation11 [shape = 'u8[98304]{0}', space=vmem, size = 0x18000, scoped, tag = 'input window, operand 7, single buffered']
    #allocation12 [shape = 's32[1]{0}', space=sflag, size = 0x4, scoped, tag = 'scoped memory for tpu_custom_call.1']
    #allocation13 [shape = 'u8[32768]{0}', space=vmem, size = 0x8000, scoped, tag = 'input window, operand 9, single buffered']
    #allocation14 [shape = 'u8[4096]{0}', space=vmem, size = 0x1000, scoped, tag = 'output window, operand 0, single buffered']
    %16 = vsyncpa [#allocation6], 0
    %17 = vsyncpa [#allocation9], 0
    %18 = vsyncpa [#allocation12], 0
    %19 = vsyncpa [#allocation7], 0
    // Predicated region
    $region2: #{tpu_custom_call.1} parent=1 // pred_check
      _
    $region3: #{tpu_custom_call.1} parent=1 // pred_check_branch
      %21 = sbr.rel (0) target = $region5
    $region4: #{tpu_custom_call.1} parent=1 // pred_region
      %s23 = ssub.s32 512, 512
      %24 = vsyncadd [#allocation6], %s23
      %s26 = sshll.u32 [#allocation5], 4
      %s27 = int_to_ptr.vmem [resolvable:$true] %s26
      %29 = dma.hbm_to_vmem [thread:$0]  %s0, 512, %s27, [#allocation6]
    $region5: #{tpu_custom_call.1} parent=1 // pred_fallthru
      _
    // Predicated region
    $region6: #{tpu_custom_call.1} parent=1 // pred_check
      _
    $region7: #{tpu_custom_call.1} parent=1 // pred_check_branch
      %31 = sbr.rel (0) target = $region9
    $region8: #{tpu_custom_call.1} parent=1 // pred_region
      _
    $region9: #{tpu_custom_call.1} parent=1 // pred_fallthru
      _
    // Predicated region
    $region10: #{tpu_custom_call.1} parent=1 // pred_check
      _
    $region11: #{tpu_custom_call.1} parent=1 // pred_check_branch
      %33 = sbr.rel (0) target = $region13
    $region12: #{tpu_custom_call.1} parent=1 // pred_region
      %s35 = ssub.s32 512, 512
      %36 = vsyncadd [#allocation9], %s35
      %s37 = sshll.u32 [#allocation8], 4
      %s38 = int_to_ptr.vmem [resolvable:$true] %s37
      %43 = dma.hbm_to_vmem [thread:$0]  %s3, 512, %s38, [#allocation9], 64, 64, 4
    $region13: #{tpu_custom_call.1} parent=1 // pred_fallthru
      _
    // Predicated region
    $region14: #{tpu_custom_call.1} parent=1 // pred_check
      _
    $region15: #{tpu_custom_call.1} parent=1 // pred_check_branch
      %45 = sbr.rel (0) target = $region17
    $region16: #{tpu_custom_call.1} parent=1 // pred_region
      _
    $region17: #{tpu_custom_call.1} parent=1 // pred_fallthru
      _
    // Predicated region
    $region18: #{tpu_custom_call.1} parent=1 // pred_check
      _
    $region19: #{tpu_custom_call.1} parent=1 // pred_check_branch
      %47 = sbr.rel (0) target = $region21
    $region20: #{tpu_custom_call.1} parent=1 // pred_region
      %s49 = ssub.s32 3072, 3072
      %50 = vsyncadd [#allocation9], %s49
      %s51 = sshll.u32 [#allocation10], 4
      %s52 = int_to_ptr.vmem [resolvable:$true] %s51
      %57 = dma.hbm_to_vmem [thread:$0]  %s5, 3072, %s52, [#allocation9], 192, 192, 12
    $region21: #{tpu_custom_call.1} parent=1 // pred_fallthru
      _
    // Predicated region
    $region22: #{tpu_custom_call.1} parent=1 // pred_check
      _
    $region23: #{tpu_custom_call.1} parent=1 // pred_check_branch
      %59 = sbr.rel (0) target = $region25
    $region24: #{tpu_custom_call.1} parent=1 // pred_region
      _
    $region25: #{tpu_custom_call.1} parent=1 // pred_fallthru
      _
    // Predicated region
    $region26: #{tpu_custom_call.1} parent=1 // pred_check
      _
    $region27: #{tpu_custom_call.1} parent=1 // pred_check_branch
      %61 = sbr.rel (0) target = $region29
    $region28: #{tpu_custom_call.1} parent=1 // pred_region
      %s63 = ssub.s32 3072, 3072
      %64 = vsyncadd [#allocation12], %s63
      %s65 = sshll.u32 [#allocation11], 4
      %s66 = int_to_ptr.vmem [resolvable:$true] %s65
      %71 = dma.hbm_to_vmem [thread:$0]  %s7, 3072, %s66, [#allocation12], 192, 192, 12
    $region29: #{tpu_custom_call.1} parent=1 // pred_fallthru
      _
    // Predicated region
    $region30: #{tpu_custom_call.1} parent=1 // pred_check
      _
    $region31: #{tpu_custom_call.1} parent=1 // pred_check_branch
      %73 = sbr.rel (0) target = $region33
    $region32: #{tpu_custom_call.1} parent=1 // pred_region
      _
    $region33: #{tpu_custom_call.1} parent=1 // pred_fallthru
      _
    // Predicated region
    $region34: #{tpu_custom_call.1} parent=1 // pred_check
      _
    $region35: #{tpu_custom_call.1} parent=1 // pred_check_branch
      %75 = sbr.rel (0) target = $region37
    $region36: #{tpu_custom_call.1} parent=1 // pred_region
      %s77 = ssub.s32 1024, 1024
      %78 = vsyncadd [#allocation12], %s77
      %s79 = sshll.u32 [#allocation13], 4
      %s80 = int_to_ptr.vmem [resolvable:$true] %s79
      %85 = dma.hbm_to_vmem [thread:$0]  %s9, 1024, %s80, [#allocation12], 64, 64, 4
    $region37: #{tpu_custom_call.1} parent=1 // pred_fallthru
      _
    // Predicated region
    $region38: #{tpu_custom_call.1} parent=1 // pred_check
      _
    $region39: #{tpu_custom_call.1} parent=1 // pred_check_branch
      %87 = sbr.rel (0) target = $region41
    $region40: #{tpu_custom_call.1} parent=1 // pred_region
      _
    $region41: #{tpu_custom_call.1} parent=1 // pred_fallthru
      _
    // Predicated region
    $region42: #{tpu_custom_call.1} parent=1 // pred_check
      _
    $region43: #{tpu_custom_call.1} parent=1 // pred_check_branch
      %89 = sbr.rel (0) target = $region45
    $region44: #{tpu_custom_call.1} parent=1 // pred_region
      %90 = dma.done [#allocation6], 512
    $region45: #{tpu_custom_call.1} parent=1 // pred_fallthru
      _
    // Predicated region
    $region46: #{tpu_custom_call.1} parent=1 // pred_check
      _
    $region47: #{tpu_custom_call.1} parent=1 // pred_check_branch
      %92 = sbr.rel (0) target = $region49
    $region48: #{tpu_custom_call.1} parent=1 // pred_region
      %93 = dma.done [#allocation9], 512
    $region49: #{tpu_custom_call.1} parent=1 // pred_fallthru
      _
    // Predicated region
    $region50: #{tpu_custom_call.1} parent=1 // pred_check
      _
    $region51: #{tpu_custom_call.1} parent=1 // pred_check_branch
      %95 = sbr.rel (0) target = $region53
    $region52: #{tpu_custom_call.1} parent=1 // pred_region
      %96 = dma.done [#allocation9], 3072
    $region53: #{tpu_custom_call.1} parent=1 // pred_fallthru
      _
    // Predicated region
    $region54: #{tpu_custom_call.1} parent=1 // pred_check
      _
    $region55: #{tpu_custom_call.1} parent=1 // pred_check_branch
      %98 = sbr.rel (0) target = $region57
    $region56: #{tpu_custom_call.1} parent=1 // pred_region
      %99 = dma.done [#allocation12], 3072
    $region57: #{tpu_custom_call.1} parent=1 // pred_fallthru
      _
    // Predicated region
    $region58: #{tpu_custom_call.1} parent=1 // pred_check
      _
    $region59: #{tpu_custom_call.1} parent=1 // pred_check_branch
      %101 = sbr.rel (0) target = $region61
    $region60: #{tpu_custom_call.1} parent=1 // pred_region
      %102 = dma.done [#allocation12], 1024
    $region61: #{tpu_custom_call.1} parent=1 // pred_fallthru
      _
    // Predicated region
    $region62: #{tpu_custom_call.1} parent=1 // pred_check
      _
    $region63: #{tpu_custom_call.1} parent=1 // pred_check_branch
      %105 = sbr.rel target = $region65
    $region64: #{tpu_custom_call.1} parent=1 // pred_region
      %106 = sst [smem:[#allocation17]] [#allocation16]
      %107 = sst [smem:[#allocation18]] [#allocation15]
    $region65: #{tpu_custom_call.1} parent=1 // pred_fallthru
      _
    %109 = shalt.err (0)
    %s111 = sshll.u32 [#allocation2], 4
    %s112 = int_to_ptr.vmem [resolvable:$true] %s111
    %114 = dma.hbm_to_vmem [thread:$0]  %s1, 8192, %s112, [#allocation3]
    %v115 = vld [vmem:[#allocation8] sm:$0xf]
    %v116 = vld [vmem:[#allocation8 + $0x4] sm:$0xf]
    %v117 = vld [vmem:[#allocation8 + $0x8] sm:$0xf]
    %v118 = vld [vmem:[#allocation8 + $0xc] sm:$0xf]
    %v119 = vld [vmem:[#allocation8 + $0x10] sm:$0xf]
    %v120 = vld [vmem:[#allocation8 + $0x14] sm:$0xf]
    %v121 = vld [vmem:[#allocation8 + $0x18] sm:$0xf]
    %v122 = vld [vmem:[#allocation8 + $0x1c] sm:$0xf]
    %v123 = vld [vmem:[#allocation10] sm:$0xff]
    %v124 = vld [vmem:[#allocation10 + $0x8] sm:$0xf]
    %v125 = vld [vmem:[#allocation10 + $0xc] sm:$0xff]
    %v126 = vld [vmem:[#allocation10 + $0x14] sm:$0xf]
    %v127 = vld [vmem:[#allocation10 + $0x18] sm:$0xff]
    %v128 = vld [vmem:[#allocation10 + $0x20] sm:$0xf]
    %v129 = vld [vmem:[#allocation10 + $0x24] sm:$0xff]
    %v130 = vld [vmem:[#allocation10 + $0x2c] sm:$0xf]
    %v131 = vld [vmem:[#allocation10 + $0x30] sm:$0xff]
    %v132 = vld [vmem:[#allocation10 + $0x38] sm:$0xf]
    %v133 = vld [vmem:[#allocation10 + $0x3c] sm:$0xff]
    %v134 = vld [vmem:[#allocation10 + $0x44] sm:$0xf]
    %v135 = vld [vmem:[#allocation10 + $0x48] sm:$0xff]
    %v136 = vld [vmem:[#allocation10 + $0x50] sm:$0xf]
    %v137 = vld [vmem:[#allocation10 + $0x54] sm:$0xff]
    %v138 = vld [vmem:[#allocation10 + $0x5c] sm:$0xf]
    %v139 = vld [vmem:[#allocation10 + $0x60] sm:$0xff]
    %v140 = vld [vmem:[#allocation10 + $0x68] sm:$0xf]
    %v141 = vld [vmem:[#allocation10 + $0x6c] sm:$0xff]
    %v142 = vld [vmem:[#allocation10 + $0x74] sm:$0xf]
    %v143 = vld [vmem:[#allocation10 + $0x78] sm:$0xff]
    %v144 = vld [vmem:[#allocation10 + $0x80] sm:$0xf]
    %v145 = vld [vmem:[#allocation10 + $0x84] sm:$0xff]
    %v146 = vld [vmem:[#allocation10 + $0x8c] sm:$0xf]
    %v147 = vld [vmem:[#allocation10 + $0x90] sm:$0xff]
    %v148 = vld [vmem:[#allocation10 + $0x98] sm:$0xf]
    %v149 = vld [vmem:[#allocation10 + $0x9c] sm:$0xff]
    %v150 = vld [vmem:[#allocation10 + $0xa4] sm:$0xf]
    %v151 = vld [vmem:[#allocation10 + $0xa8] sm:$0xff]
    %v152 = vld [vmem:[#allocation10 + $0xb0] sm:$0xf]
    %v153 = vld [vmem:[#allocation10 + $0xb4] sm:$0xff]
    %v154 = vld [vmem:[#allocation10 + $0xbc] sm:$0xf]
    %v155 = vld [vmem:[%s6] sm:$0x7]
    %v157 = vlaneseq
    %v158 = vshrl.u32 %v157, 7
    %v159 = vsub.s32 0, %v158
    %v160 = vrot.slane %v155, %v159
    %v161 = vlaneseq
    %v162 = vshrl.u32 %v161, 7
    %v163 = vsub.s32 1, %v162
    %v164 = vrot.slane %v155, %v163
    %v165 = vlaneseq
    %v166 = vshrl.u32 %v165, 7
    %v167 = vsub.s32 2, %v166
    %v168 = vrot.slane %v155, %v167
    %v180 = vunpack.c.l.b16 %v115
    %v181 = vunpack.c.l.b16 %v116
    %v182 = vunpack.c.l.b16 %v117
    %v183 = vunpack.c.l.b16 %v118
    %v184 = vunpack.c.l.b16 %v119
    %v185 = vunpack.c.l.b16 %v120
    %v186 = vunpack.c.l.b16 %v121
    %v187 = vunpack.c.l.b16 %v122
    %v188 = vpack.c.b16 %v181, %v180
    %v189 = vpack.c.b16 %v183, %v182
    %v190 = vpack.c.b16 %v185, %v184
    %v191 = vpack.c.b16 %v187, %v186
    %v228 = vunpack.c.l.b16 %v123
    %v229 = vunpack.c.h.b16 %v123
    %v230 = vunpack.c.l.b16 %v124
    %v231 = vunpack.c.l.b16 %v125
    %v232 = vunpack.c.h.b16 %v125
    %v233 = vunpack.c.l.b16 %v126
    %v234 = vunpack.c.l.b16 %v127
    %v235 = vunpack.c.h.b16 %v127
    %v236 = vunpack.c.l.b16 %v128
    %v237 = vunpack.c.l.b16 %v129
    %v238 = vunpack.c.h.b16 %v129
    %v239 = vunpack.c.l.b16 %v130
    %v240 = vunpack.c.l.b16 %v131
    %v241 = vunpack.c.h.b16 %v131
    %v242 = vunpack.c.l.b16 %v132
    %v243 = vunpack.c.l.b16 %v133
    %v244 = vunpack.c.h.b16 %v133
    %v245 = vunpack.c.l.b16 %v134
    %v246 = vunpack.c.l.b16 %v135
    %v247 = vunpack.c.h.b16 %v135
    %v248 = vunpack.c.l.b16 %v136
    %v249 = vunpack.c.l.b16 %v137
    %v250 = vunpack.c.h.b16 %v137
    %v251 = vunpack.c.l.b16 %v138
    %v252 = vunpack.c.l.b16 %v139
    %v253 = vunpack.c.h.b16 %v139
    %v254 = vunpack.c.l.b16 %v140
    %v255 = vunpack.c.l.b16 %v141
    %v256 = vunpack.c.h.b16 %v141
    %v257 = vunpack.c.l.b16 %v142
    %v258 = vunpack.c.l.b16 %v143
    %v259 = vunpack.c.h.b16 %v143
    %v260 = vunpack.c.l.b16 %v144
    %v261 = vunpack.c.l.b16 %v145
    %v262 = vunpack.c.h.b16 %v145
    %v263 = vunpack.c.l.b16 %v146
    %v264 = vunpack.c.l.b16 %v147
    %v265 = vunpack.c.h.b16 %v147
    %v266 = vunpack.c.l.b16 %v148
    %v267 = vunpack.c.l.b16 %v149
    %v268 = vunpack.c.h.b16 %v149
    %v269 = vunpack.c.l.b16 %v150
    %v270 = vunpack.c.l.b16 %v151
    %v271 = vunpack.c.h.b16 %v151
    %v272 = vunpack.c.l.b16 %v152
    %v273 = vunpack.c.l.b16 %v153
    %v274 = vunpack.c.h.b16 %v153
    %v275 = vunpack.c.l.b16 %v154
    %v276 = vpack.c.b16 %v231, %v228
    %v277 = vpack.c.b16 %v232, %v229
    %v278 = vpack.c.b16 %v233, %v230
    %v279 = vpack.c.b16 %v237, %v234
    %v280 = vpack.c.b16 %v238, %v235
    %v281 = vpack.c.b16 %v239, %v236
    %v282 = vpack.c.b16 %v243, %v240
    %v283 = vpack.c.b16 %v244, %v241
    %v284 = vpack.c.b16 %v245, %v242
    %v285 = vpack.c.b16 %v249, %v246
    %v286 = vpack.c.b16 %v250, %v247
    %v287 = vpack.c.b16 %v251, %v248
    %v288 = vpack.c.b16 %v255, %v252
    %v289 = vpack.c.b16 %v256, %v253
    %v290 = vpack.c.b16 %v257, %v254
    %v291 = vpack.c.b16 %v261, %v258
    %v292 = vpack.c.b16 %v262, %v259
    %v293 = vpack.c.b16 %v263, %v260
    %v294 = vpack.c.b16 %v267, %v264
    %v295 = vpack.c.b16 %v268, %v265
    %v296 = vpack.c.b16 %v269, %v266
    %v297 = vpack.c.b16 %v273, %v270
    %v298 = vpack.c.b16 %v274, %v271
    %v299 = vpack.c.b16 %v275, %v272
    %324 = vmatprep.subr.bf16.mxu0 %v277
    %325 = vmatpush1.bf16.msra.mxu0 %v276
    %326 = vmatprep.subr.bf16.mxu0 %v280
    %327 = vmatpush1.bf16.msra.mxu0 %v279
    %328 = vmatprep.subr.bf16.mxu0 %v283
    %329 = vmatpush1.bf16.msra.mxu0 %v282
    %330 = vmatprep.subr.bf16.mxu0 %v286
    %331 = vmatpush1.bf16.msra.mxu0 %v285
    %332 = vmatprep.subr.bf16.mxu0 %v289
    %333 = vmatpush1.bf16.msra.mxu0 %v288
    %334 = vmatprep.subr.bf16.mxu0 %v292
    %335 = vmatpush1.bf16.msra.mxu0 %v291
    %336 = vmatprep.subr.bf16.mxu0 %v295
    %337 = vmatpush1.bf16.msra.mxu0 %v294
    %338 = vmatprep.subr.bf16.mxu0 %v298
    %339 = vmatpush1.bf16.msra.mxu0 %v297
    %340 = vmatprep.subr.bf16.mxu0 0
    %341 = vmatpush1.bf16.msra.mxu0 0
    %342 = vmatprep.subr.bf16.mxu0 0
    %343 = vmatpush1.bf16.msra.mxu0 0
    %344 = vmatprep.subr.bf16.mxu0 0
    %345 = vmatpush1.bf16.msra.mxu0 0
    %346 = vmatprep.subr.bf16.mxu0 0
    %347 = vmatpush1.bf16.msra.mxu0 0
    %348 = vmatprep.subr.bf16.mxu0 0
    %349 = vmatpush1.bf16.msra.mxu0 0
    %350 = vmatprep.subr.bf16.mxu0 0
    %351 = vmatpush1.bf16.msra.mxu0 0
    %352 = vmatprep.subr.bf16.mxu0 0
    %353 = vmatpush1.bf16.msra.mxu0 0
    %354 = vmatprep.subr.bf16.mxu0 0
    %355 = vmatpush1.bf16.msra.mxu0 0
    %356 = vmatprep.mubr.bf16.mxu0 0
    %357 = vmatmul.mubr.bf16.gmra.mrb[0].mxu0 %v188
    %v358 = vpop.f32.mrb[0].mxu0
    %v359 = vadd.f32 %v160, %v358
    %v360 = vpop.f32.mrb[0].mxu0
    %v361 = vadd.f32 %v164, %v360
    %v362 = vpop.f32.mrb[0].mxu0
    %v363 = vadd.f32 %v160, %v362
    %v364 = vpop.f32.mrb[0].mxu0
    %v365 = vadd.f32 %v164, %v364
    %366 = vmatprep.mubr.bf16.mxu0 0
    %367 = vmatmul.mubr.bf16.gmra.mrb[0].mxu0 %v189
    %v368 = vpop.f32.mrb[0].mxu0
    %v369 = vadd.f32 %v160, %v368
    %v370 = vpop.f32.mrb[0].mxu0
    %v371 = vadd.f32 %v164, %v370
    %v372 = vpop.f32.mrb[0].mxu0
    %v373 = vadd.f32 %v160, %v372
    %v374 = vpop.f32.mrb[0].mxu0
    %v375 = vadd.f32 %v164, %v374
    %376 = vmatprep.mubr.bf16.mxu0 0
    %377 = vmatmul.mubr.bf16.gmra.mrb[0].mxu0 %v190
    %v378 = vpop.f32.mrb[0].mxu0
    %v379 = vadd.f32 %v160, %v378
    %v380 = vpop.f32.mrb[0].mxu0
    %v381 = vadd.f32 %v164, %v380
    %v382 = vpop.f32.mrb[0].mxu0
    %v383 = vadd.f32 %v160, %v382
    %v384 = vpop.f32.mrb[0].mxu0
    %v385 = vadd.f32 %v164, %v384
    %386 = vmatprep.mubr.bf16.mxu0 0
    %387 = vmatmul.mubr.bf16.gmra.mrb[0].mxu0 %v191
    %v388 = vpop.f32.mrb[0].mxu0
    %v389 = vadd.f32 %v160, %v388
    %v390 = vpop.f32.mrb[0].mxu0
    %v391 = vadd.f32 %v164, %v390
    %v392 = vpop.f32.mrb[0].mxu0
    %v393 = vadd.f32 %v160, %v392
    %v394 = vpop.f32.mrb[0].mxu0
    %v395 = vadd.f32 %v164, %v394
    %396 = vdwg.mxu0
    %397 = vmatprep.subr.bf16.mxu0 0
    %398 = vmatpush1.bf16.msra.mxu0 %v278
    %399 = vmatprep.subr.bf16.mxu0 0
    %400 = vmatpush1.bf16.msra.mxu0 %v281
    %401 = vmatprep.subr.bf16.mxu0 0
    %402 = vmatpush1.bf16.msra.mxu0 %v284
    %403 = vmatprep.subr.bf16.mxu0 0
    %404 = vmatpush1.bf16.msra.mxu0 %v287
    %405 = vmatprep.subr.bf16.mxu0 0
    %406 = vmatpush1.bf16.msra.mxu0 %v290
    %407 = vmatprep.subr.bf16.mxu0 0
    %408 = vmatpush1.bf16.msra.mxu0 %v293
    %409 = vmatprep.subr.bf16.mxu0 0
    %410 = vmatpush1.bf16.msra.mxu0 %v296
    %411 = vmatprep.subr.bf16.mxu0 0
    %412 = vmatpush1.bf16.msra.mxu0 %v299
    %413 = vmatprep.subr.bf16.mxu0 0
    %414 = vmatpush1.bf16.msra.mxu0 0
    %415 = vmatprep.subr.bf16.mxu0 0
    %416 = vmatpush1.bf16.msra.mxu0 0
    %417 = vmatprep.subr.bf16.mxu0 0
    %418 = vmatpush1.bf16.msra.mxu0 0
    %419 = vmatprep.subr.bf16.mxu0 0
    %420 = vmatpush1.bf16.msra.mxu0 0
    %421 = vmatprep.subr.bf16.mxu0 0
    %422 = vmatpush1.bf16.msra.mxu0 0
    %423 = vmatprep.subr.bf16.mxu0 0
    %424 = vmatpush1.bf16.msra.mxu0 0
    %425 = vmatprep.subr.bf16.mxu0 0
    %426 = vmatpush1.bf16.msra.mxu0 0
    %427 = vmatprep.subr.bf16.mxu0 0
    %428 = vmatpush1.bf16.msra.mxu0 0
    %429 = vmatprep.mubr.bf16.mxu0 0
    %430 = vmatmul.mubr.bf16.gmra.mrb[0].mxu0 %v188
    %v431 = vpop.f32.mrb[0].mxu0
    %v432 = vadd.f32 %v168, %v431
    %v433 = vpop.f32.mrb[0].mxu0
    %v434 = vpop.f32.mrb[0].mxu0
    %v435 = vadd.f32 %v168, %v434
    %v436 = vpop.f32.mrb[0].mxu0
    %437 = vmatprep.mubr.bf16.mxu0 0
    %438 = vmatmul.mubr.bf16.gmra.mrb[0].mxu0 %v189
    %v439 = vpop.f32.mrb[0].mxu0
    %v440 = vadd.f32 %v168, %v439
    %v441 = vpop.f32.mrb[0].mxu0
    %v442 = vpop.f32.mrb[0].mxu0
    %v443 = vadd.f32 %v168, %v442
    %v444 = vpop.f32.mrb[0].mxu0
    %445 = vmatprep.mubr.bf16.mxu0 0
    %446 = vmatmul.mubr.bf16.gmra.mrb[0].mxu0 %v190
    %v447 = vpop.f32.mrb[0].mxu0
    %v448 = vadd.f32 %v168, %v447
    %v449 = vpop.f32.mrb[0].mxu0
    %v450 = vpop.f32.mrb[0].mxu0
    %v451 = vadd.f32 %v168, %v450
    %v452 = vpop.f32.mrb[0].mxu0
    %453 = vmatprep.mubr.bf16.mxu0 0
    %454 = vmatmul.mubr.bf16.gmra.mrb[0].mxu0 %v191
    %v455 = vpop.f32.mrb[0].mxu0
    %v456 = vadd.f32 %v168, %v455
    %v457 = vpop.f32.mrb[0].mxu0
    %v458 = vpop.f32.mrb[0].mxu0
    %v459 = vadd.f32 %v168, %v458
    %v460 = vpop.f32.mrb[0].mxu0
    %461 = vdwg.mxu0
    %462 = vst [vmem:[#allocation4] sm:$0xff] %v359
    %463 = vst [vmem:[#allocation4 + $0x8] sm:$0xff] %v361
    %464 = vst [vmem:[#allocation4 + $0x10] sm:$0xff] %v432
    %465 = vst [vmem:[#allocation4 + $0x18] sm:$0xff] %v363
    %466 = vst [vmem:[#allocation4 + $0x20] sm:$0xff] %v365
    %467 = vst [vmem:[#allocation4 + $0x28] sm:$0xff] %v435
    %468 = vst [vmem:[#allocation4 + $0x30] sm:$0xff] %v369
    %469 = vst [vmem:[#allocation4 + $0x38] sm:$0xff] %v371
    %470 = vst [vmem:[#allocation4 + $0x40] sm:$0xff] %v440
    %471 = vst [vmem:[#allocation4 + $0x48] sm:$0xff] %v373
    %472 = vst [vmem:[#allocation4 + $0x50] sm:$0xff] %v375
    %473 = vst [vmem:[#allocation4 + $0x58] sm:$0xff] %v443
    %474 = vst [vmem:[#allocation4 + $0x60] sm:$0xff] %v379
    %475 = vst [vmem:[#allocation4 + $0x68] sm:$0xff] %v381
    %476 = vst [vmem:[#allocation4 + $0x70] sm:$0xff] %v448
    %477 = vst [vmem:[#allocation4 + $0x78] sm:$0xff] %v383
    %478 = vst [vmem:[#allocation4 + $0x80] sm:$0xff] %v385
    %479 = vst [vmem:[#allocation4 + $0x88] sm:$0xff] %v451
    %480 = vst [vmem:[#allocation4 + $0x90] sm:$0xff] %v389
    %481 = vst [vmem:[#allocation4 + $0x98] sm:$0xff] %v391
    %482 = vst [vmem:[#allocation4 + $0xa0] sm:$0xff] %v456
    %483 = vst [vmem:[#allocation4 + $0xa8] sm:$0xff] %v393
    %484 = vst [vmem:[#allocation4 + $0xb0] sm:$0xff] %v395
    %485 = vst [vmem:[#allocation4 + $0xb8] sm:$0xff] %v459
    %v486 = vld [vmem:[%s4] sm:$0xff]
    %487 = vset.pattern.permute.xlu0 0
    %488 = vperm.xlu0 %487, %v486
    %v489 = vpop.permute.xlu0 %488
    %v490 = vld [vmem:[#allocation4] sm:$0xff]
    %v491 = vld [vmem:[#allocation4 + $0x8] sm:$0xff]
    %v492 = vld [vmem:[#allocation4 + $0x10] sm:$0xff]
    %v493 = vld [vmem:[#allocation11] sm:$0xff]
    %v494 = vld [vmem:[#allocation11 + $0x8] sm:$0xf]
    %v495 = vld [vmem:[#allocation11 + $0xc] sm:$0xff]
    %v496 = vld [vmem:[#allocation11 + $0x14] sm:$0xf]
    %v497 = vld [vmem:[#allocation11 + $0x18] sm:$0xff]
    %v498 = vld [vmem:[#allocation11 + $0x20] sm:$0xf]
    %v499 = vld [vmem:[#allocation11 + $0x24] sm:$0xff]
    %v500 = vld [vmem:[#allocation11 + $0x2c] sm:$0xf]
    %v501 = vld [vmem:[#allocation11 + $0x30] sm:$0xff]
    %v502 = vld [vmem:[#allocation11 + $0x38] sm:$0xf]
    %v503 = vld [vmem:[#allocation11 + $0x3c] sm:$0xff]
    %v504 = vld [vmem:[#allocation11 + $0x44] sm:$0xf]
    %v505 = vld [vmem:[#allocation11 + $0x48] sm:$0xff]
    %v506 = vld [vmem:[#allocation11 + $0x50] sm:$0xf]
    %v507 = vld [vmem:[#allocation11 + $0x54] sm:$0xff]
    %v508 = vld [vmem:[#allocation11 + $0x5c] sm:$0xf]
    %v509 = vld [vmem:[#allocation11 + $0x60] sm:$0xff]
    %v510 = vld [vmem:[#allocation11 + $0x68] sm:$0xf]
    %v511 = vld [vmem:[#allocation11 + $0x6c] sm:$0xff]
    %v512 = vld [vmem:[#allocation11 + $0x74] sm:$0xf]
    %v513 = vld [vmem:[#allocation11 + $0x78] sm:$0xff]
    %v514 = vld [vmem:[#allocation11 + $0x80] sm:$0xf]
    %v515 = vld [vmem:[#allocation11 + $0x84] sm:$0xff]
    %v516 = vld [vmem:[#allocation11 + $0x8c] sm:$0xf]
    %v517 = vld [vmem:[#allocation11 + $0x90] sm:$0xff]
    %v518 = vld [vmem:[#allocation11 + $0x98] sm:$0xf]
    %v519 = vld [vmem:[#allocation11 + $0x9c] sm:$0xff]
    %v520 = vld [vmem:[#allocation11 + $0xa4] sm:$0xf]
    %v521 = vld [vmem:[#allocation11 + $0xa8] sm:$0xff]
    %v522 = vld [vmem:[#allocation11 + $0xb0] sm:$0xf]
    %v523 = vld [vmem:[#allocation11 + $0xb4] sm:$0xff]
    %v524 = vld [vmem:[#allocation11 + $0xbc] sm:$0xf]
    %v525 = vld [vmem:[%s8] sm:$0x7]
    %v527 = vlaneseq
    %v528 = vshrl.u32 %v527, 7
    %v529 = vsub.s32 0, %v528
    %v530 = vrot.slane %v525, %v529
    %v531 = vlaneseq
    %v532 = vshrl.u32 %v531, 7
    %v533 = vsub.s32 1, %v532
    %v534 = vrot.slane %v525, %v533
    %v535 = vlaneseq
    %v536 = vshrl.u32 %v535, 7
    %v537 = vsub.s32 2, %v536
    %v538 = vrot.slane %v525, %v537
    %v574 = vunpack.c.l.b16 %v493
    %v575 = vunpack.c.h.b16 %v493
    %v576 = vunpack.c.l.b16 %v494
    %v577 = vunpack.c.l.b16 %v495
    %v578 = vunpack.c.h.b16 %v495
    %v579 = vunpack.c.l.b16 %v496
    %v580 = vunpack.c.l.b16 %v497
    %v581 = vunpack.c.h.b16 %v497
    %v582 = vunpack.c.l.b16 %v498
    %v583 = vunpack.c.l.b16 %v499
    %v584 = vunpack.c.h.b16 %v499
    %v585 = vunpack.c.l.b16 %v500
    %v586 = vunpack.c.l.b16 %v501
    %v587 = vunpack.c.h.b16 %v501
    %v588 = vunpack.c.l.b16 %v502
    %v589 = vunpack.c.l.b16 %v503
    %v590 = vunpack.c.h.b16 %v503
    %v591 = vunpack.c.l.b16 %v504
    %v592 = vunpack.c.l.b16 %v505
    %v593 = vunpack.c.h.b16 %v505
    %v594 = vunpack.c.l.b16 %v506
    %v595 = vunpack.c.l.b16 %v507
    %v596 = vunpack.c.h.b16 %v507
    %v597 = vunpack.c.l.b16 %v508
    %v598 = vunpack.c.l.b16 %v509
    %v599 = vunpack.c.h.b16 %v509
    %v600 = vunpack.c.l.b16 %v510
    %v601 = vunpack.c.l.b16 %v511
    %v602 = vunpack.c.h.b16 %v511
    %v603 = vunpack.c.l.b16 %v512
    %v604 = vunpack.c.l.b16 %v513
    %v605 = vunpack.c.h.b16 %v513
    %v606 = vunpack.c.l.b16 %v514
    %v607 = vunpack.c.l.b16 %v515
    %v608 = vunpack.c.h.b16 %v515
    %v609 = vunpack.c.l.b16 %v516
    %v610 = vunpack.c.l.b16 %v517
    %v611 = vunpack.c.h.b16 %v517
    %v612 = vunpack.c.l.b16 %v518
    %v613 = vunpack.c.l.b16 %v519
    %v614 = vunpack.c.h.b16 %v519
    %v615 = vunpack.c.l.b16 %v520
    %v616 = vunpack.c.l.b16 %v521
    %v617 = vunpack.c.h.b16 %v521
    %v618 = vunpack.c.l.b16 %v522
    %v619 = vunpack.c.l.b16 %v523
    %v620 = vunpack.c.h.b16 %v523
    %v621 = vunpack.c.l.b16 %v524
    %v622 = vpack.c.b16 %v577, %v574
    %v623 = vpack.c.b16 %v578, %v575
    %v624 = vpack.c.b16 %v579, %v576
    %v625 = vpack.c.b16 %v583, %v580
    %v626 = vpack.c.b16 %v584, %v581
    %v627 = vpack.c.b16 %v585, %v582
    %v628 = vpack.c.b16 %v589, %v586
    %v629 = vpack.c.b16 %v590, %v587
    %v630 = vpack.c.b16 %v591, %v588
    %v631 = vpack.c.b16 %v595, %v592
    %v632 = vpack.c.b16 %v596, %v593
    %v633 = vpack.c.b16 %v597, %v594
    %v634 = vpack.c.b16 %v601, %v598
    %v635 = vpack.c.b16 %v602, %v599
    %v636 = vpack.c.b16 %v603, %v600
    %v637 = vpack.c.b16 %v607, %v604
    %v638 = vpack.c.b16 %v608, %v605
    %v639 = vpack.c.b16 %v609, %v606
    %v640 = vpack.c.b16 %v613, %v610
    %v641 = vpack.c.b16 %v614, %v611
    %v642 = vpack.c.b16 %v615, %v612
    %v643 = vpack.c.b16 %v619, %v616
    %v644 = vpack.c.b16 %v620, %v617
    %v645 = vpack.c.b16 %v621, %v618
    %670 = vmatprep.subr.bf16.mxu0 %v623
    %671 = vmatpush1.bf16.msra.mxu0 %v622
    %672 = vmatprep.subr.bf16.mxu0 %v626
    %673 = vmatpush1.bf16.msra.mxu0 %v625
    %674 = vmatprep.subr.bf16.mxu0 %v629
    %675 = vmatpush1.bf16.msra.mxu0 %v628
    %676 = vmatprep.subr.bf16.mxu0 %v632
    %677 = vmatpush1.bf16.msra.mxu0 %v631
    %678 = vmatprep.subr.bf16.mxu0 %v635
    %679 = vmatpush1.bf16.msra.mxu0 %v634
    %680 = vmatprep.subr.bf16.mxu0 %v638
    %681 = vmatpush1.bf16.msra.mxu0 %v637
    %682 = vmatprep.subr.bf16.mxu0 %v641
    %683 = vmatpush1.bf16.msra.mxu0 %v640
    %684 = vmatprep.subr.bf16.mxu0 %v644
    %685 = vmatpush1.bf16.msra.mxu0 %v643
    %686 = vmatprep.subr.bf16.mxu0 0
    %687 = vmatpush1.bf16.msra.mxu0 0
    %688 = vmatprep.subr.bf16.mxu0 0
    %689 = vmatpush1.bf16.msra.mxu0 0
    %690 = vmatprep.subr.bf16.mxu0 0
    %691 = vmatpush1.bf16.msra.mxu0 0
    %692 = vmatprep.subr.bf16.mxu0 0
    %693 = vmatpush1.bf16.msra.mxu0 0
    %694 = vmatprep.subr.bf16.mxu0 0
    %695 = vmatpush1.bf16.msra.mxu0 0
    %696 = vmatprep.subr.bf16.mxu0 0
    %697 = vmatpush1.bf16.msra.mxu0 0
    %698 = vmatprep.subr.bf16.mxu0 0
    %699 = vmatpush1.bf16.msra.mxu0 0
    %700 = vmatprep.subr.bf16.mxu0 0
    %701 = vmatpush1.bf16.msra.mxu0 0
    %702 = vmatprep.mubr.bf16.mxu0 0
    %703 = vmatmul.mubr.bf16.gmra.mrb[0].mxu0 0
    %v704 = vpop.f32.mrb[0].mxu0
    %v705 = vadd.f32 %v530, %v704
    %v706 = vpop.f32.mrb[0].mxu0
    %v707 = vadd.f32 %v534, %v706
    %v708 = vpop.f32.mrb[0].mxu0
    %v709 = vpop.f32.mrb[0].mxu0
    %710 = vdwg.mxu0
    %711 = vmatprep.subr.bf16.mxu0 0
    %712 = vmatpush1.bf16.msra.mxu0 %v624
    %713 = vmatprep.subr.bf16.mxu0 0
    %714 = vmatpush1.bf16.msra.mxu0 %v627
    %715 = vmatprep.subr.bf16.mxu0 0
    %716 = vmatpush1.bf16.msra.mxu0 %v630
    %717 = vmatprep.subr.bf16.mxu0 0
    %718 = vmatpush1.bf16.msra.mxu0 %v633
    %719 = vmatprep.subr.bf16.mxu0 0
    %720 = vmatpush1.bf16.msra.mxu0 %v636
    %721 = vmatprep.subr.bf16.mxu0 0
    %722 = vmatpush1.bf16.msra.mxu0 %v639
    %723 = vmatprep.subr.bf16.mxu0 0
    %724 = vmatpush1.bf16.msra.mxu0 %v642
    %725 = vmatprep.subr.bf16.mxu0 0
    %726 = vmatpush1.bf16.msra.mxu0 %v645
    %727 = vmatprep.subr.bf16.mxu0 0
    %728 = vmatpush1.bf16.msra.mxu0 0
    %729 = vmatprep.subr.bf16.mxu0 0
    %730 = vmatpush1.bf16.msra.mxu0 0
    %731 = vmatprep.subr.bf16.mxu0 0
    %732 = vmatpush1.bf16.msra.mxu0 0
    %733 = vmatprep.subr.bf16.mxu0 0
    %734 = vmatpush1.bf16.msra.mxu0 0
    %735 = vmatprep.subr.bf16.mxu0 0
    %736 = vmatpush1.bf16.msra.mxu0 0
    %737 = vmatprep.subr.bf16.mxu0 0
    %738 = vmatpush1.bf16.msra.mxu0 0
    %739 = vmatprep.subr.bf16.mxu0 0
    %740 = vmatpush1.bf16.msra.mxu0 0
    %741 = vmatprep.subr.bf16.mxu0 0
    %742 = vmatpush1.bf16.msra.mxu0 0
    %743 = vmatprep.mubr.bf16.mxu0 0
    %744 = vmatmul.mubr.bf16.gmra.mrb[0].mxu0 0
    %v745 = vpop.f32.mrb[0].mxu0
    %v746 = vadd.f32 %v538, %v745
    %v747 = vpop.f32.mrb[0].mxu0
    %v748 = vpop.f32.mrb[0].mxu0
    %v749 = vpop.f32.mrb[0].mxu0
    %750 = vdwg.mxu0
    %v751 = vadd.f32 %v490, %v705
    %v752 = vxor.u32 %v751, 2147483648
    %v753 = vmul.f32 %v752, 1.442695
    %v754 = vpow.pop %v753
    %v755 = vadd.f32 %v754, 1.0
    %v756 = vrcp.pop %v755
    %v757 = vmul.f32 1.0, %v756
    %v758 = vadd.f32 %v491, %v707
    %v759 = vxor.u32 %v758, 2147483648
    %v760 = vmul.f32 %v759, 1.442695
    %v761 = vpow.pop %v760
    %v762 = vadd.f32 %v761, 1.0
    %v763 = vrcp.pop %v762
    %v764 = vmul.f32 1.0, %v763
    %v765 = vmul.f32 %v757, %v746
    %v766 = vadd.f32 %v492, %v765
    %v767 = vtanh.pop %v766
    %v768 = vsub.f32 1.0, %v764
    %v769 = vmul.f32 %v768, %v767
    %v770 = vmul.f32 %v764, 0.0
    %v771 = vadd.f32 %v769, %v770
    %vm772 = vcmp.gt.s32.totalorder %v489, 0
    %v773 = vsel %vm772, %v771, 0.0
    %v774 = vld [vmem:[#allocation4 + $0x18] sm:$0xff]
    %v775 = vld [vmem:[#allocation4 + $0x20] sm:$0xff]
    %v776 = vld [vmem:[#allocation4 + $0x28] sm:$0xff]
    %v777 = vpack.c.bf16 %v773, %v773
    %778 = vmatprep.subr.bf16.mxu0 %v623
    %779 = vmatpush1.bf16.msra.mxu0 %v622
    %780 = vmatprep.subr.bf16.mxu0 %v626
    %781 = vmatpush1.bf16.msra.mxu0 %v625
    %782 = vmatprep.subr.bf16.mxu0 %v629
    %783 = vmatpush1.bf16.msra.mxu0 %v628
    %784 = vmatprep.subr.bf16.mxu0 %v632
    %785 = vmatpush1.bf16.msra.mxu0 %v631
    %786 = vmatprep.subr.bf16.mxu0 %v635
    %787 = vmatpush1.bf16.msra.mxu0 %v634
    %788 = vmatprep.subr.bf16.mxu0 %v638
    %789 = vmatpush1.bf16.msra.mxu0 %v637
    %790 = vmatprep.subr.bf16.mxu0 %v641
    %791 = vmatpush1.bf16.msra.mxu0 %v640
    %792 = vmatprep.subr.bf16.mxu0 %v644
    %793 = vmatpush1.bf16.msra.mxu0 %v643
    %794 = vmatprep.subr.bf16.mxu0 0
    %795 = vmatpush1.bf16.msra.mxu0 0
    %796 = vmatprep.subr.bf16.mxu0 0
    %797 = vmatpush1.bf16.msra.mxu0 0
    %798 = vmatprep.subr.bf16.mxu0 0
    %799 = vmatpush1.bf16.msra.mxu0 0
    %800 = vmatprep.subr.bf16.mxu0 0
    %801 = vmatpush1.bf16.msra.mxu0 0
    %802 = vmatprep.subr.bf16.mxu0 0
    %803 = vmatpush1.bf16.msra.mxu0 0
    %804 = vmatprep.subr.bf16.mxu0 0
    %805 = vmatpush1.bf16.msra.mxu0 0
    %806 = vmatprep.subr.bf16.mxu0 0
    %807 = vmatpush1.bf16.msra.mxu0 0
    %808 = vmatprep.subr.bf16.mxu0 0
    %809 = vmatpush1.bf16.msra.mxu0 0
    %810 = vmatprep.mubr.bf16.mxu0 0
    %811 = vmatmul.mubr.bf16.gmra.mrb[0].mxu0 %v777
    %v812 = vpop.f32.mrb[0].mxu0
    %v813 = vadd.f32 %v530, %v812
    %v814 = vpop.f32.mrb[0].mxu0
    %v815 = vadd.f32 %v534, %v814
    %v816 = vpop.f32.mrb[0].mxu0
    %v817 = vpop.f32.mrb[0].mxu0
    %818 = vdwg.mxu0
    %819 = vmatprep.subr.bf16.mxu0 0
    %820 = vmatpush1.bf16.msra.mxu0 %v624
    %821 = vmatprep.subr.bf16.mxu0 0
    %822 = vmatpush1.bf16.msra.mxu0 %v627
    %823 = vmatprep.subr.bf16.mxu0 0
    %824 = vmatpush1.bf16.msra.mxu0 %v630
    %825 = vmatprep.subr.bf16.mxu0 0
    %826 = vmatpush1.bf16.msra.mxu0 %v633
    %827 = vmatprep.subr.bf16.mxu0 0
    %828 = vmatpush1.bf16.msra.mxu0 %v636
    %829 = vmatprep.subr.bf16.mxu0 0
    %830 = vmatpush1.bf16.msra.mxu0 %v639
    %831 = vmatprep.subr.bf16.mxu0 0
    %832 = vmatpush1.bf16.msra.mxu0 %v642
    %833 = vmatprep.subr.bf16.mxu0 0
    %834 = vmatpush1.bf16.msra.mxu0 %v645
    %835 = vmatprep.subr.bf16.mxu0 0
    %836 = vmatpush1.bf16.msra.mxu0 0
    %837 = vmatprep.subr.bf16.mxu0 0
    %838 = vmatpush1.bf16.msra.mxu0 0
    %839 = vmatprep.subr.bf16.mxu0 0
    %840 = vmatpush1.bf16.msra.mxu0 0
    %841 = vmatprep.subr.bf16.mxu0 0
    %842 = vmatpush1.bf16.msra.mxu0 0
    %843 = vmatprep.subr.bf16.mxu0 0
    %844 = vmatpush1.bf16.msra.mxu0 0
    %845 = vmatprep.subr.bf16.mxu0 0
    %846 = vmatpush1.bf16.msra.mxu0 0
    %847 = vmatprep.subr.bf16.mxu0 0
    %848 = vmatpush1.bf16.msra.mxu0 0
    %849 = vmatprep.subr.bf16.mxu0 0
    %850 = vmatpush1.bf16.msra.mxu0 0
    %851 = vmatprep.mubr.bf16.mxu0 0
    %852 = vmatmul.mubr.bf16.gmra.mrb[0].mxu0 %v777
    %v853 = vpop.f32.mrb[0].mxu0
    %v854 = vadd.f32 %v538, %v853
    %v855 = vpop.f32.mrb[0].mxu0
    %v856 = vpop.f32.mrb[0].mxu0
    %v857 = vpop.f32.mrb[0].mxu0
    %858 = vdwg.mxu0
    %v859 = vadd.f32 %v774, %v813
    %v860 = vxor.u32 %v859, 2147483648
    %v861 = vmul.f32 %v860, 1.442695
    %v862 = vpow.pop %v861
    %v863 = vadd.f32 %v862, 1.0
    %v864 = vrcp.pop %v863
    %v865 = vmul.f32 1.0, %v864
    %v866 = vadd.f32 %v775, %v815
    %v867 = vxor.u32 %v866, 2147483648
    %v868 = vmul.f32 %v867, 1.442695
    %v869 = vpow.pop %v868
    %v870 = vadd.f32 %v869, 1.0
    %v871 = vrcp.pop %v870
    %v872 = vmul.f32 1.0, %v871
    %v873 = vmul.f32 %v865, %v854
    %v874 = vadd.f32 %v776, %v873
    %v875 = vtanh.pop %v874
    %v876 = vsub.f32 1.0, %v872
    %v877 = vmul.f32 %v876, %v875
    %v878 = vmul.f32 %v872, %v773
    %v879 = vadd.f32 %v877, %v878
    %vm880 = vcmp.gt.s32.totalorder %v489, 1
    %v881 = vsel %vm880, %v879, %v773
    %v882 = vld [vmem:[#allocation4 + $0x30] sm:$0xff]
    %v883 = vld [vmem:[#allocation4 + $0x38] sm:$0xff]
    %v884 = vld [vmem:[#allocation4 + $0x40] sm:$0xff]
    %v885 = vpack.c.bf16 %v881, %v881
    %886 = vmatprep.subr.bf16.mxu0 %v623
    %887 = vmatpush1.bf16.msra.mxu0 %v622
    %888 = vmatprep.subr.bf16.mxu0 %v626
    %889 = vmatpush1.bf16.msra.mxu0 %v625
    %890 = vmatprep.subr.bf16.mxu0 %v629
    %891 = vmatpush1.bf16.msra.mxu0 %v628
    %892 = vmatprep.subr.bf16.mxu0 %v632
    %893 = vmatpush1.bf16.msra.mxu0 %v631
    %894 = vmatprep.subr.bf16.mxu0 %v635
    %895 = vmatpush1.bf16.msra.mxu0 %v634
    %896 = vmatprep.subr.bf16.mxu0 %v638
    %897 = vmatpush1.bf16.msra.mxu0 %v637
    %898 = vmatprep.subr.bf16.mxu0 %v641
    %899 = vmatpush1.bf16.msra.mxu0 %v640
    %900 = vmatprep.subr.bf16.mxu0 %v644
    %901 = vmatpush1.bf16.msra.mxu0 %v643
    %902 = vmatprep.subr.bf16.mxu0 0
    %903 = vmatpush1.bf16.msra.mxu0 0
    %904 = vmatprep.subr.bf16.mxu0 0
    %905 = vmatpush1.bf16.msra.mxu0 0
    %906 = vmatprep.subr.bf16.mxu0 0
    %907 = vmatpush1.bf16.msra.mxu0 0
    %908 = vmatprep.subr.bf16.mxu0 0
    %909 = vmatpush1.bf16.msra.mxu0 0
    %910 = vmatprep.subr.bf16.mxu0 0
    %911 = vmatpush1.bf16.msra.mxu0 0
    %912 = vmatprep.subr.bf16.mxu0 0
    %913 = vmatpush1.bf16.msra.mxu0 0
    %914 = vmatprep.subr.bf16.mxu0 0
    %915 = vmatpush1.bf16.msra.mxu0 0
    %916 = vmatprep.subr.bf16.mxu0 0
    %917 = vmatpush1.bf16.msra.mxu0 0
    %918 = vmatprep.mubr.bf16.mxu0 0
    %919 = vmatmul.mubr.bf16.gmra.mrb[0].mxu0 %v885
    %v920 = vpop.f32.mrb[0].mxu0
    %v921 = vadd.f32 %v530, %v920
    %v922 = vpop.f32.mrb[0].mxu0
    %v923 = vadd.f32 %v534, %v922
    %v924 = vpop.f32.mrb[0].mxu0
    %v925 = vpop.f32.mrb[0].mxu0
    %926 = vdwg.mxu0
    %927 = vmatprep.subr.bf16.mxu0 0
    %928 = vmatpush1.bf16.msra.mxu0 %v624
    %929 = vmatprep.subr.bf16.mxu0 0
    %930 = vmatpush1.bf16.msra.mxu0 %v627
    %931 = vmatprep.subr.bf16.mxu0 0
    %932 = vmatpush1.bf16.msra.mxu0 %v630
    %933 = vmatprep.subr.bf16.mxu0 0
    %934 = vmatpush1.bf16.msra.mxu0 %v633
    %935 = vmatprep.subr.bf16.mxu0 0
    %936 = vmatpush1.bf16.msra.mxu0 %v636
    %937 = vmatprep.subr.bf16.mxu0 0
    %938 = vmatpush1.bf16.msra.mxu0 %v639
    %939 = vmatprep.subr.bf16.mxu0 0
    %940 = vmatpush1.bf16.msra.mxu0 %v642
    %941 = vmatprep.subr.bf16.mxu0 0
    %942 = vmatpush1.bf16.msra.mxu0 %v645
    %943 = vmatprep.subr.bf16.mxu0 0
    %944 = vmatpush1.bf16.msra.mxu0 0
    %945 = vmatprep.subr.bf16.mxu0 0
    %946 = vmatpush1.bf16.msra.mxu0 0
    %947 = vmatprep.subr.bf16.mxu0 0
    %948 = vmatpush1.bf16.msra.mxu0 0
    %949 = vmatprep.subr.bf16.mxu0 0
    %950 = vmatpush1.bf16.msra.mxu0 0
    %951 = vmatprep.subr.bf16.mxu0 0
    %952 = vmatpush1.bf16.msra.mxu0 0
    %953 = vmatprep.subr.bf16.mxu0 0
    %954 = vmatpush1.bf16.msra.mxu0 0
    %955 = vmatprep.subr.bf16.mxu0 0
    %956 = vmatpush1.bf16.msra.mxu0 0
    %957 = vmatprep.subr.bf16.mxu0 0
    %958 = vmatpush1.bf16.msra.mxu0 0
    %959 = vmatprep.mubr.bf16.mxu0 0
    %960 = vmatmul.mubr.bf16.gmra.mrb[0].mxu0 %v885
    %v961 = vpop.f32.mrb[0].mxu0
    %v962 = vadd.f32 %v538, %v961
    %v963 = vpop.f32.mrb[0].mxu0
    %v964 = vpop.f32.mrb[0].mxu0
    %v965 = vpop.f32.mrb[0].mxu0
    %966 = vdwg.mxu0
    %v967 = vadd.f32 %v882, %v921
    %v968 = vxor.u32 %v967, 2147483648
    %v969 = vmul.f32 %v968, 1.442695
    %v970 = vpow.pop %v969
    %v971 = vadd.f32 %v970, 1.0
    %v972 = vrcp.pop %v971
    %v973 = vmul.f32 1.0, %v972
    %v974 = vadd.f32 %v883, %v923
    %v975 = vxor.u32 %v974, 2147483648
    %v976 = vmul.f32 %v975, 1.442695
    %v977 = vpow.pop %v976
    %v978 = vadd.f32 %v977, 1.0
    %v979 = vrcp.pop %v978
    %v980 = vmul.f32 1.0, %v979
    %v981 = vmul.f32 %v973, %v962
    %v982 = vadd.f32 %v884, %v981
    %v983 = vtanh.pop %v982
    %v984 = vsub.f32 1.0, %v980
    %v985 = vmul.f32 %v984, %v983
    %v986 = vmul.f32 %v980, %v881
    %v987 = vadd.f32 %v985, %v986
    %vm988 = vcmp.gt.s32.totalorder %v489, 2
    %v989 = vsel %vm988, %v987, %v881
    %v990 = vld [vmem:[#allocation4 + $0x48] sm:$0xff]
    %v991 = vld [vmem:[#allocation4 + $0x50] sm:$0xff]
    %v992 = vld [vmem:[#allocation4 + $0x58] sm:$0xff]
    %v993 = vpack.c.bf16 %v989, %v989
    %994 = vmatprep.subr.bf16.mxu0 %v623
    %995 = vmatpush1.bf16.msra.mxu0 %v622
    %996 = vmatprep.subr.bf16.mxu0 %v626
    %997 = vmatpush1.bf16.msra.mxu0 %v625
    %998 = vmatprep.subr.bf16.mxu0 %v629
    %999 = vmatpush1.bf16.msra.mxu0 %v628
    %1000 = vmatprep.subr.bf16.mxu0 %v632
    %1001 = vmatpush1.bf16.msra.mxu0 %v631
    %1002 = vmatprep.subr.bf16.mxu0 %v635
    %1003 = vmatpush1.bf16.msra.mxu0 %v634
    %1004 = vmatprep.subr.bf16.mxu0 %v638
    %1005 = vmatpush1.bf16.msra.mxu0 %v637
    %1006 = vmatprep.subr.bf16.mxu0 %v641
    %1007 = vmatpush1.bf16.msra.mxu0 %v640
    %1008 = vmatprep.subr.bf16.mxu0 %v644
    %1009 = vmatpush1.bf16.msra.mxu0 %v643
    %1010 = vmatprep.subr.bf16.mxu0 0
    %1011 = vmatpush1.bf16.msra.mxu0 0
    %1012 = vmatprep.subr.bf16.mxu0 0
    %1013 = vmatpush1.bf16.msra.mxu0 0
    %1014 = vmatprep.subr.bf16.mxu0 0
    %1015 = vmatpush1.bf16.msra.mxu0 0
    %1016 = vmatprep.subr.bf16.mxu0 0
    %1017 = vmatpush1.bf16.msra.mxu0 0
    %1018 = vmatprep.subr.bf16.mxu0 0
    %1019 = vmatpush1.bf16.msra.mxu0 0
    %1020 = vmatprep.subr.bf16.mxu0 0
    %1021 = vmatpush1.bf16.msra.mxu0 0
    %1022 = vmatprep.subr.bf16.mxu0 0
    %1023 = vmatpush1.bf16.msra.mxu0 0
    %1024 = vmatprep.subr.bf16.mxu0 0
    %1025 = vmatpush1.bf16.msra.mxu0 0
    %1026 = vmatprep.mubr.bf16.mxu0 0
    %1027 = vmatmul.mubr.bf16.gmra.mrb[0].mxu0 %v993
    %v1028 = vpop.f32.mrb[0].mxu0
    %v1029 = vadd.f32 %v530, %v1028
    %v1030 = vpop.f32.mrb[0].mxu0
    %v1031 = vadd.f32 %v534, %v1030
    %v1032 = vpop.f32.mrb[0].mxu0
    %v1033 = vpop.f32.mrb[0].mxu0
    %1034 = vdwg.mxu0
    %1035 = vmatprep.subr.bf16.mxu0 0
    %1036 = vmatpush1.bf16.msra.mxu0 %v624
    %1037 = vmatprep.subr.bf16.mxu0 0
    %1038 = vmatpush1.bf16.msra.mxu0 %v627
    %1039 = vmatprep.subr.bf16.mxu0 0
    %1040 = vmatpush1.bf16.msra.mxu0 %v630
    %1041 = vmatprep.subr.bf16.mxu0 0
    %1042 = vmatpush1.bf16.msra.mxu0 %v633
    %1043 = vmatprep.subr.bf16.mxu0 0
    %1044 = vmatpush1.bf16.msra.mxu0 %v636
    %1045 = vmatprep.subr.bf16.mxu0 0
    %1046 = vmatpush1.bf16.msra.mxu0 %v639
    %1047 = vmatprep.subr.bf16.mxu0 0
    %1048 = vmatpush1.bf16.msra.mxu0 %v642
    %1049 = vmatprep.subr.bf16.mxu0 0
    %1050 = vmatpush1.bf16.msra.mxu0 %v645
    %1051 = vmatprep.subr.bf16.mxu0 0
    %1052 = vmatpush1.bf16.msra.mxu0 0
    %1053 = vmatprep.subr.bf16.mxu0 0
    %1054 = vmatpush1.bf16.msra.mxu0 0
    %1055 = vmatprep.subr.bf16.mxu0 0
    %1056 = vmatpush1.bf16.msra.mxu0 0
    %1057 = vmatprep.subr.bf16.mxu0 0
    %1058 = vmatpush1.bf16.msra.mxu0 0
    %1059 = vmatprep.subr.bf16.mxu0 0
    %1060 = vmatpush1.bf16.msra.mxu0 0
    %1061 = vmatprep.subr.bf16.mxu0 0
    %1062 = vmatpush1.bf16.msra.mxu0 0
    %1063 = vmatprep.subr.bf16.mxu0 0
    %1064 = vmatpush1.bf16.msra.mxu0 0
    %1065 = vmatprep.subr.bf16.mxu0 0
    %1066 = vmatpush1.bf16.msra.mxu0 0
    %1067 = vmatprep.mubr.bf16.mxu0 0
    %1068 = vmatmul.mubr.bf16.gmra.mrb[0].mxu0 %v993
    %v1069 = vpop.f32.mrb[0].mxu0
    %v1070 = vadd.f32 %v538, %v1069
    %v1071 = vpop.f32.mrb[0].mxu0
    %v1072 = vpop.f32.mrb[0].mxu0
    %v1073 = vpop.f32.mrb[0].mxu0
    %1074 = vdwg.mxu0
    %v1075 = vadd.f32 %v990, %v1029
    %v1076 = vxor.u32 %v1075, 2147483648
    %v1077 = vmul.f32 %v1076, 1.442695
    %v1078 = vpow.pop %v1077
    %v1079 = vadd.f32 %v1078, 1.0
    %v1080 = vrcp.pop %v1079
    %v1081 = vmul.f32 1.0, %v1080
    %v1082 = vadd.f32 %v991, %v1031
    %v1083 = vxor.u32 %v1082, 2147483648
    %v1084 = vmul.f32 %v1083, 1.442695
    %v1085 = vpow.pop %v1084
    %v1086 = vadd.f32 %v1085, 1.0
    %v1087 = vrcp.pop %v1086
    %v1088 = vmul.f32 1.0, %v1087
    %v1089 = vmul.f32 %v1081, %v1070
    %v1090 = vadd.f32 %v992, %v1089
    %v1091 = vtanh.pop %v1090
    %v1092 = vsub.f32 1.0, %v1088
    %v1093 = vmul.f32 %v1092, %v1091
    %v1094 = vmul.f32 %v1088, %v989
    %v1095 = vadd.f32 %v1093, %v1094
    %vm1096 = vcmp.gt.s32.totalorder %v489, 3
    %v1097 = vsel %vm1096, %v1095, %v989
    %v1098 = vld [vmem:[#allocation4 + $0x60] sm:$0xff]
    %v1099 = vld [vmem:[#allocation4 + $0x68] sm:$0xff]
    %v1100 = vld [vmem:[#allocation4 + $0x70] sm:$0xff]
    %v1101 = vpack.c.bf16 %v1097, %v1097
    %1102 = vmatprep.subr.bf16.mxu0 %v623
    %1103 = vmatpush1.bf16.msra.mxu0 %v622
    %1104 = vmatprep.subr.bf16.mxu0 %v626
    %1105 = vmatpush1.bf16.msra.mxu0 %v625
    %1106 = vmatprep.subr.bf16.mxu0 %v629
    %1107 = vmatpush1.bf16.msra.mxu0 %v628
    %1108 = vmatprep.subr.bf16.mxu0 %v632
    %1109 = vmatpush1.bf16.msra.mxu0 %v631
    %1110 = vmatprep.subr.bf16.mxu0 %v635
    %1111 = vmatpush1.bf16.msra.mxu0 %v634
    %1112 = vmatprep.subr.bf16.mxu0 %v638
    %1113 = vmatpush1.bf16.msra.mxu0 %v637
    %1114 = vmatprep.subr.bf16.mxu0 %v641
    %1115 = vmatpush1.bf16.msra.mxu0 %v640
    %1116 = vmatprep.subr.bf16.mxu0 %v644
    %1117 = vmatpush1.bf16.msra.mxu0 %v643
    %1118 = vmatprep.subr.bf16.mxu0 0
    %1119 = vmatpush1.bf16.msra.mxu0 0
    %1120 = vmatprep.subr.bf16.mxu0 0
    %1121 = vmatpush1.bf16.msra.mxu0 0
    %1122 = vmatprep.subr.bf16.mxu0 0
    %1123 = vmatpush1.bf16.msra.mxu0 0
    %1124 = vmatprep.subr.bf16.mxu0 0
    %1125 = vmatpush1.bf16.msra.mxu0 0
    %1126 = vmatprep.subr.bf16.mxu0 0
    %1127 = vmatpush1.bf16.msra.mxu0 0
    %1128 = vmatprep.subr.bf16.mxu0 0
    %1129 = vmatpush1.bf16.msra.mxu0 0
    %1130 = vmatprep.subr.bf16.mxu0 0
    %1131 = vmatpush1.bf16.msra.mxu0 0
    %1132 = vmatprep.subr.bf16.mxu0 0
    %1133 = vmatpush1.bf16.msra.mxu0 0
    %1134 = vmatprep.mubr.bf16.mxu0 0
    %1135 = vmatmul.mubr.bf16.gmra.mrb[0].mxu0 %v1101
    %v1136 = vpop.f32.mrb[0].mxu0
    %v1137 = vadd.f32 %v530, %v1136
    %v1138 = vpop.f32.mrb[0].mxu0
    %v1139 = vadd.f32 %v534, %v1138
    %v1140 = vpop.f32.mrb[0].mxu0
    %v1141 = vpop.f32.mrb[0].mxu0
    %1142 = vdwg.mxu0
    %1143 = vmatprep.subr.bf16.mxu0 0
    %1144 = vmatpush1.bf16.msra.mxu0 %v624
    %1145 = vmatprep.subr.bf16.mxu0 0
    %1146 = vmatpush1.bf16.msra.mxu0 %v627
    %1147 = vmatprep.subr.bf16.mxu0 0
    %1148 = vmatpush1.bf16.msra.mxu0 %v630
    %1149 = vmatprep.subr.bf16.mxu0 0
    %1150 = vmatpush1.bf16.msra.mxu0 %v633
    %1151 = vmatprep.subr.bf16.mxu0 0
    %1152 = vmatpush1.bf16.msra.mxu0 %v636
    %1153 = vmatprep.subr.bf16.mxu0 0
    %1154 = vmatpush1.bf16.msra.mxu0 %v639
    %1155 = vmatprep.subr.bf16.mxu0 0
    %1156 = vmatpush1.bf16.msra.mxu0 %v642
    %1157 = vmatprep.subr.bf16.mxu0 0
    %1158 = vmatpush1.bf16.msra.mxu0 %v645
    %1159 = vmatprep.subr.bf16.mxu0 0
    %1160 = vmatpush1.bf16.msra.mxu0 0
    %1161 = vmatprep.subr.bf16.mxu0 0
    %1162 = vmatpush1.bf16.msra.mxu0 0
    %1163 = vmatprep.subr.bf16.mxu0 0
    %1164 = vmatpush1.bf16.msra.mxu0 0
    %1165 = vmatprep.subr.bf16.mxu0 0
    %1166 = vmatpush1.bf16.msra.mxu0 0
    %1167 = vmatprep.subr.bf16.mxu0 0
    %1168 = vmatpush1.bf16.msra.mxu0 0
    %1169 = vmatprep.subr.bf16.mxu0 0
    %1170 = vmatpush1.bf16.msra.mxu0 0
    %1171 = vmatprep.subr.bf16.mxu0 0
    %1172 = vmatpush1.bf16.msra.mxu0 0
    %1173 = vmatprep.subr.bf16.mxu0 0
    %1174 = vmatpush1.bf16.msra.mxu0 0
    %1175 = vmatprep.mubr.bf16.mxu0 0
    %1176 = vmatmul.mubr.bf16.gmra.mrb[0].mxu0 %v1101
    %v1177 = vpop.f32.mrb[0].mxu0
    %v1178 = vadd.f32 %v538, %v1177
    %v1179 = vpop.f32.mrb[0].mxu0
    %v1180 = vpop.f32.mrb[0].mxu0
    %v1181 = vpop.f32.mrb[0].mxu0
    %1182 = vdwg.mxu0
    %v1183 = vadd.f32 %v1098, %v1137
    %v1184 = vxor.u32 %v1183, 2147483648
    %v1185 = vmul.f32 %v1184, 1.442695
    %v1186 = vpow.pop %v1185
    %v1187 = vadd.f32 %v1186, 1.0
    %v1188 = vrcp.pop %v1187
    %v1189 = vmul.f32 1.0, %v1188
    %v1190 = vadd.f32 %v1099, %v1139
    %v1191 = vxor.u32 %v1190, 2147483648
    %v1192 = vmul.f32 %v1191, 1.442695
    %v1193 = vpow.pop %v1192
    %v1194 = vadd.f32 %v1193, 1.0
    %v1195 = vrcp.pop %v1194
    %v1196 = vmul.f32 1.0, %v1195
    %v1197 = vmul.f32 %v1189, %v1178
    %v1198 = vadd.f32 %v1100, %v1197
    %v1199 = vtanh.pop %v1198
    %v1200 = vsub.f32 1.0, %v1196
    %v1201 = vmul.f32 %v1200, %v1199
    %v1202 = vmul.f32 %v1196, %v1097
    %v1203 = vadd.f32 %v1201, %v1202
    %vm1204 = vcmp.gt.s32.totalorder %v489, 4
    %v1205 = vsel %vm1204, %v1203, %v1097
    %v1206 = vld [vmem:[#allocation4 + $0x78] sm:$0xff]
    %v1207 = vld [vmem:[#allocation4 + $0x80] sm:$0xff]
    %v1208 = vld [vmem:[#allocation4 + $0x88] sm:$0xff]
    %v1209 = vpack.c.bf16 %v1205, %v1205
    %1210 = vmatprep.subr.bf16.mxu0 %v623
    %1211 = vmatpush1.bf16.msra.mxu0 %v622
    %1212 = vmatprep.subr.bf16.mxu0 %v626
    %1213 = vmatpush1.bf16.msra.mxu0 %v625
    %1214 = vmatprep.subr.bf16.mxu0 %v629
    %1215 = vmatpush1.bf16.msra.mxu0 %v628
    %1216 = vmatprep.subr.bf16.mxu0 %v632
    %1217 = vmatpush1.bf16.msra.mxu0 %v631
    %1218 = vmatprep.subr.bf16.mxu0 %v635
    %1219 = vmatpush1.bf16.msra.mxu0 %v634
    %1220 = vmatprep.subr.bf16.mxu0 %v638
    %1221 = vmatpush1.bf16.msra.mxu0 %v637
    %1222 = vmatprep.subr.bf16.mxu0 %v641
    %1223 = vmatpush1.bf16.msra.mxu0 %v640
    %1224 = vmatprep.subr.bf16.mxu0 %v644
    %1225 = vmatpush1.bf16.msra.mxu0 %v643
    %1226 = vmatprep.subr.bf16.mxu0 0
    %1227 = vmatpush1.bf16.msra.mxu0 0
    %1228 = vmatprep.subr.bf16.mxu0 0
    %1229 = vmatpush1.bf16.msra.mxu0 0
    %1230 = vmatprep.subr.bf16.mxu0 0
    %1231 = vmatpush1.bf16.msra.mxu0 0
    %1232 = vmatprep.subr.bf16.mxu0 0
    %1233 = vmatpush1.bf16.msra.mxu0 0
    %1234 = vmatprep.subr.bf16.mxu0 0
    %1235 = vmatpush1.bf16.msra.mxu0 0
    %1236 = vmatprep.subr.bf16.mxu0 0
    %1237 = vmatpush1.bf16.msra.mxu0 0
    %1238 = vmatprep.subr.bf16.mxu0 0
    %1239 = vmatpush1.bf16.msra.mxu0 0
    %1240 = vmatprep.subr.bf16.mxu0 0
    %1241 = vmatpush1.bf16.msra.mxu0 0
    %1242 = vmatprep.mubr.bf16.mxu0 0
    %1243 = vmatmul.mubr.bf16.gmra.mrb[0].mxu0 %v1209
    %v1244 = vpop.f32.mrb[0].mxu0
    %v1245 = vadd.f32 %v530, %v1244
    %v1246 = vpop.f32.mrb[0].mxu0
    %v1247 = vadd.f32 %v534, %v1246
    %v1248 = vpop.f32.mrb[0].mxu0
    %v1249 = vpop.f32.mrb[0].mxu0
    %1250 = vdwg.mxu0
    %1251 = vmatprep.subr.bf16.mxu0 0
    %1252 = vmatpush1.bf16.msra.mxu0 %v624
    %1253 = vmatprep.subr.bf16.mxu0 0
    %1254 = vmatpush1.bf16.msra.mxu0 %v627
    %1255 = vmatprep.subr.bf16.mxu0 0
    %1256 = vmatpush1.bf16.msra.mxu0 %v630
    %1257 = vmatprep.subr.bf16.mxu0 0
    %1258 = vmatpush1.bf16.msra.mxu0 %v633
    %1259 = vmatprep.subr.bf16.mxu0 0
    %1260 = vmatpush1.bf16.msra.mxu0 %v636
    %1261 = vmatprep.subr.bf16.mxu0 0
    %1262 = vmatpush1.bf16.msra.mxu0 %v639
    %1263 = vmatprep.subr.bf16.mxu0 0
    %1264 = vmatpush1.bf16.msra.mxu0 %v642
    %1265 = vmatprep.subr.bf16.mxu0 0
    %1266 = vmatpush1.bf16.msra.mxu0 %v645
    %1267 = vmatprep.subr.bf16.mxu0 0
    %1268 = vmatpush1.bf16.msra.mxu0 0
    %1269 = vmatprep.subr.bf16.mxu0 0
    %1270 = vmatpush1.bf16.msra.mxu0 0
    %1271 = vmatprep.subr.bf16.mxu0 0
    %1272 = vmatpush1.bf16.msra.mxu0 0
    %1273 = vmatprep.subr.bf16.mxu0 0
    %1274 = vmatpush1.bf16.msra.mxu0 0
    %1275 = vmatprep.subr.bf16.mxu0 0
    %1276 = vmatpush1.bf16.msra.mxu0 0
    %1277 = vmatprep.subr.bf16.mxu0 0
    %1278 = vmatpush1.bf16.msra.mxu0 0
    %1279 = vmatprep.subr.bf16.mxu0 0
    %1280 = vmatpush1.bf16.msra.mxu0 0
    %1281 = vmatprep.subr.bf16.mxu0 0
    %1282 = vmatpush1.bf16.msra.mxu0 0
    %1283 = vmatprep.mubr.bf16.mxu0 0
    %1284 = vmatmul.mubr.bf16.gmra.mrb[0].mxu0 %v1209
    %v1285 = vpop.f32.mrb[0].mxu0
    %v1286 = vadd.f32 %v538, %v1285
    %v1287 = vpop.f32.mrb[0].mxu0
    %v1288 = vpop.f32.mrb[0].mxu0
    %v1289 = vpop.f32.mrb[0].mxu0
    %1290 = vdwg.mxu0
    %v1291 = vadd.f32 %v1206, %v1245
    %v1292 = vxor.u32 %v1291, 2147483648
    %v1293 = vmul.f32 %v1292, 1.442695
    %v1294 = vpow.pop %v1293
    %v1295 = vadd.f32 %v1294, 1.0
    %v1296 = vrcp.pop %v1295
    %v1297 = vmul.f32 1.0, %v1296
    %v1298 = vadd.f32 %v1207, %v1247
    %v1299 = vxor.u32 %v1298, 2147483648
    %v1300 = vmul.f32 %v1299, 1.442695
    %v1301 = vpow.pop %v1300
    %v1302 = vadd.f32 %v1301, 1.0
    %v1303 = vrcp.pop %v1302
    %v1304 = vmul.f32 1.0, %v1303
    %v1305 = vmul.f32 %v1297, %v1286
    %v1306 = vadd.f32 %v1208, %v1305
    %v1307 = vtanh.pop %v1306
    %v1308 = vsub.f32 1.0, %v1304
    %v1309 = vmul.f32 %v1308, %v1307
    %v1310 = vmul.f32 %v1304, %v1205
    %v1311 = vadd.f32 %v1309, %v1310
    %vm1312 = vcmp.gt.s32.totalorder %v489, 5
    %v1313 = vsel %vm1312, %v1311, %v1205
    %v1314 = vld [vmem:[#allocation4 + $0x90] sm:$0xff]
    %v1315 = vld [vmem:[#allocation4 + $0x98] sm:$0xff]
    %v1316 = vld [vmem:[#allocation4 + $0xa0] sm:$0xff]
    %v1317 = vpack.c.bf16 %v1313, %v1313
    %1318 = vmatprep.subr.bf16.mxu0 %v623
    %1319 = vmatpush1.bf16.msra.mxu0 %v622
    %1320 = vmatprep.subr.bf16.mxu0 %v626
    %1321 = vmatpush1.bf16.msra.mxu0 %v625
    %1322 = vmatprep.subr.bf16.mxu0 %v629
    %1323 = vmatpush1.bf16.msra.mxu0 %v628
    %1324 = vmatprep.subr.bf16.mxu0 %v632
    %1325 = vmatpush1.bf16.msra.mxu0 %v631
    %1326 = vmatprep.subr.bf16.mxu0 %v635
    %1327 = vmatpush1.bf16.msra.mxu0 %v634
    %1328 = vmatprep.subr.bf16.mxu0 %v638
    %1329 = vmatpush1.bf16.msra.mxu0 %v637
    %1330 = vmatprep.subr.bf16.mxu0 %v641
    %1331 = vmatpush1.bf16.msra.mxu0 %v640
    %1332 = vmatprep.subr.bf16.mxu0 %v644
    %1333 = vmatpush1.bf16.msra.mxu0 %v643
    %1334 = vmatprep.subr.bf16.mxu0 0
    %1335 = vmatpush1.bf16.msra.mxu0 0
    %1336 = vmatprep.subr.bf16.mxu0 0
    %1337 = vmatpush1.bf16.msra.mxu0 0
    %1338 = vmatprep.subr.bf16.mxu0 0
    %1339 = vmatpush1.bf16.msra.mxu0 0
    %1340 = vmatprep.subr.bf16.mxu0 0
    %1341 = vmatpush1.bf16.msra.mxu0 0
    %1342 = vmatprep.subr.bf16.mxu0 0
    %1343 = vmatpush1.bf16.msra.mxu0 0
    %1344 = vmatprep.subr.bf16.mxu0 0
    %1345 = vmatpush1.bf16.msra.mxu0 0
    %1346 = vmatprep.subr.bf16.mxu0 0
    %1347 = vmatpush1.bf16.msra.mxu0 0
    %1348 = vmatprep.subr.bf16.mxu0 0
    %1349 = vmatpush1.bf16.msra.mxu0 0
    %1350 = vmatprep.mubr.bf16.mxu0 0
    %1351 = vmatmul.mubr.bf16.gmra.mrb[0].mxu0 %v1317
    %v1352 = vpop.f32.mrb[0].mxu0
    %v1353 = vadd.f32 %v530, %v1352
    %v1354 = vpop.f32.mrb[0].mxu0
    %v1355 = vadd.f32 %v534, %v1354
    %v1356 = vpop.f32.mrb[0].mxu0
    %v1357 = vpop.f32.mrb[0].mxu0
    %1358 = vdwg.mxu0
    %1359 = vmatprep.subr.bf16.mxu0 0
    %1360 = vmatpush1.bf16.msra.mxu0 %v624
    %1361 = vmatprep.subr.bf16.mxu0 0
    %1362 = vmatpush1.bf16.msra.mxu0 %v627
    %1363 = vmatprep.subr.bf16.mxu0 0
    %1364 = vmatpush1.bf16.msra.mxu0 %v630
    %1365 = vmatprep.subr.bf16.mxu0 0
    %1366 = vmatpush1.bf16.msra.mxu0 %v633
    %1367 = vmatprep.subr.bf16.mxu0 0
    %1368 = vmatpush1.bf16.msra.mxu0 %v636
    %1369 = vmatprep.subr.bf16.mxu0 0
    %1370 = vmatpush1.bf16.msra.mxu0 %v639
    %1371 = vmatprep.subr.bf16.mxu0 0
    %1372 = vmatpush1.bf16.msra.mxu0 %v642
    %1373 = vmatprep.subr.bf16.mxu0 0
    %1374 = vmatpush1.bf16.msra.mxu0 %v645
    %1375 = vmatprep.subr.bf16.mxu0 0
    %1376 = vmatpush1.bf16.msra.mxu0 0
    %1377 = vmatprep.subr.bf16.mxu0 0
    %1378 = vmatpush1.bf16.msra.mxu0 0
    %1379 = vmatprep.subr.bf16.mxu0 0
    %1380 = vmatpush1.bf16.msra.mxu0 0
    %1381 = vmatprep.subr.bf16.mxu0 0
    %1382 = vmatpush1.bf16.msra.mxu0 0
    %1383 = vmatprep.subr.bf16.mxu0 0
    %1384 = vmatpush1.bf16.msra.mxu0 0
    %1385 = vmatprep.subr.bf16.mxu0 0
    %1386 = vmatpush1.bf16.msra.mxu0 0
    %1387 = vmatprep.subr.bf16.mxu0 0
    %1388 = vmatpush1.bf16.msra.mxu0 0
    %1389 = vmatprep.subr.bf16.mxu0 0
    %1390 = vmatpush1.bf16.msra.mxu0 0
    %1391 = vmatprep.mubr.bf16.mxu0 0
    %1392 = vmatmul.mubr.bf16.gmra.mrb[0].mxu0 %v1317
    %v1393 = vpop.f32.mrb[0].mxu0
    %v1394 = vadd.f32 %v538, %v1393
    %v1395 = vpop.f32.mrb[0].mxu0
    %v1396 = vpop.f32.mrb[0].mxu0
    %v1397 = vpop.f32.mrb[0].mxu0
    %1398 = vdwg.mxu0
    %v1399 = vadd.f32 %v1314, %v1353
    %v1400 = vxor.u32 %v1399, 2147483648
    %v1401 = vmul.f32 %v1400, 1.442695
    %v1402 = vpow.pop %v1401
    %v1403 = vadd.f32 %v1402, 1.0
    %v1404 = vrcp.pop %v1403
    %v1405 = vmul.f32 1.0, %v1404
    %v1406 = vadd.f32 %v1315, %v1355
    %v1407 = vxor.u32 %v1406, 2147483648
    %v1408 = vmul.f32 %v1407, 1.442695
    %v1409 = vpow.pop %v1408
    %v1410 = vadd.f32 %v1409, 1.0
    %v1411 = vrcp.pop %v1410
    %v1412 = vmul.f32 1.0, %v1411
    %v1413 = vmul.f32 %v1405, %v1394
    %v1414 = vadd.f32 %v1316, %v1413
    %v1415 = vtanh.pop %v1414
    %v1416 = vsub.f32 1.0, %v1412
    %v1417 = vmul.f32 %v1416, %v1415
    %v1418 = vmul.f32 %v1412, %v1313
    %v1419 = vadd.f32 %v1417, %v1418
    %vm1420 = vcmp.gt.s32.totalorder %v489, 6
    %v1421 = vsel %vm1420, %v1419, %v1313
    %v1422 = vld [vmem:[#allocation4 + $0xa8] sm:$0xff]
    %v1423 = vld [vmem:[#allocation4 + $0xb0] sm:$0xff]
    %v1424 = vld [vmem:[#allocation4 + $0xb8] sm:$0xff]
    %v1425 = vpack.c.bf16 %v1421, %v1421
    %1426 = vmatprep.subr.bf16.mxu0 %v623
    %1427 = vmatpush1.bf16.msra.mxu0 %v622
    %1428 = vmatprep.subr.bf16.mxu0 %v626
    %1429 = vmatpush1.bf16.msra.mxu0 %v625
    %1430 = vmatprep.subr.bf16.mxu0 %v629
    %1431 = vmatpush1.bf16.msra.mxu0 %v628
    %1432 = vmatprep.subr.bf16.mxu0 %v632
    %1433 = vmatpush1.bf16.msra.mxu0 %v631
    %1434 = vmatprep.subr.bf16.mxu0 %v635
    %1435 = vmatpush1.bf16.msra.mxu0 %v634
    %1436 = vmatprep.subr.bf16.mxu0 %v638
    %1437 = vmatpush1.bf16.msra.mxu0 %v637
    %1438 = vmatprep.subr.bf16.mxu0 %v641
    %1439 = vmatpush1.bf16.msra.mxu0 %v640
    %1440 = vmatprep.subr.bf16.mxu0 %v644
    %1441 = vmatpush1.bf16.msra.mxu0 %v643
    %1442 = vmatprep.subr.bf16.mxu0 0
    %1443 = vmatpush1.bf16.msra.mxu0 0
    %1444 = vmatprep.subr.bf16.mxu0 0
    %1445 = vmatpush1.bf16.msra.mxu0 0
    %1446 = vmatprep.subr.bf16.mxu0 0
    %1447 = vmatpush1.bf16.msra.mxu0 0
    %1448 = vmatprep.subr.bf16.mxu0 0
    %1449 = vmatpush1.bf16.msra.mxu0 0
    %1450 = vmatprep.subr.bf16.mxu0 0
    %1451 = vmatpush1.bf16.msra.mxu0 0
    %1452 = vmatprep.subr.bf16.mxu0 0
    %1453 = vmatpush1.bf16.msra.mxu0 0
    %1454 = vmatprep.subr.bf16.mxu0 0
    %1455 = vmatpush1.bf16.msra.mxu0 0
    %1456 = vmatprep.subr.bf16.mxu0 0
    %1457 = vmatpush1.bf16.msra.mxu0 0
    %1458 = vmatprep.mubr.bf16.mxu0 0
    %1459 = vmatmul.mubr.bf16.gmra.mrb[0].mxu0 %v1425
    %v1460 = vpop.f32.mrb[0].mxu0
    %v1461 = vadd.f32 %v530, %v1460
    %v1462 = vpop.f32.mrb[0].mxu0
    %v1463 = vadd.f32 %v534, %v1462
    %v1464 = vpop.f32.mrb[0].mxu0
    %v1465 = vpop.f32.mrb[0].mxu0
    %1466 = vdwg.mxu0
    %1467 = vmatprep.subr.bf16.mxu0 0
    %1468 = vmatpush1.bf16.msra.mxu0 %v624
    %1469 = vmatprep.subr.bf16.mxu0 0
    %1470 = vmatpush1.bf16.msra.mxu0 %v627
    %1471 = vmatprep.subr.bf16.mxu0 0
    %1472 = vmatpush1.bf16.msra.mxu0 %v630
    %1473 = vmatprep.subr.bf16.mxu0 0
    %1474 = vmatpush1.bf16.msra.mxu0 %v633
    %1475 = vmatprep.subr.bf16.mxu0 0
    %1476 = vmatpush1.bf16.msra.mxu0 %v636
    %1477 = vmatprep.subr.bf16.mxu0 0
    %1478 = vmatpush1.bf16.msra.mxu0 %v639
    %1479 = vmatprep.subr.bf16.mxu0 0
    %1480 = vmatpush1.bf16.msra.mxu0 %v642
    %1481 = vmatprep.subr.bf16.mxu0 0
    %1482 = vmatpush1.bf16.msra.mxu0 %v645
    %1483 = vmatprep.subr.bf16.mxu0 0
    %1484 = vmatpush1.bf16.msra.mxu0 0
    %1485 = vmatprep.subr.bf16.mxu0 0
    %1486 = vmatpush1.bf16.msra.mxu0 0
    %1487 = vmatprep.subr.bf16.mxu0 0
    %1488 = vmatpush1.bf16.msra.mxu0 0
    %1489 = vmatprep.subr.bf16.mxu0 0
    %1490 = vmatpush1.bf16.msra.mxu0 0
    %1491 = vmatprep.subr.bf16.mxu0 0
    %1492 = vmatpush1.bf16.msra.mxu0 0
    %1493 = vmatprep.subr.bf16.mxu0 0
    %1494 = vmatpush1.bf16.msra.mxu0 0
    %1495 = vmatprep.subr.bf16.mxu0 0
    %1496 = vmatpush1.bf16.msra.mxu0 0
    %1497 = vmatprep.subr.bf16.mxu0 0
    %1498 = vmatpush1.bf16.msra.mxu0 0
    %1499 = vmatprep.mubr.bf16.mxu0 0
    %1500 = vmatmul.mubr.bf16.gmra.mrb[0].mxu0 %v1425
    %v1501 = vpop.f32.mrb[0].mxu0
    %v1502 = vadd.f32 %v538, %v1501
    %v1503 = vpop.f32.mrb[0].mxu0
    %v1504 = vpop.f32.mrb[0].mxu0
    %v1505 = vpop.f32.mrb[0].mxu0
    %1506 = vdwg.mxu0
    %v1507 = vadd.f32 %v1422, %v1461
    %v1508 = vxor.u32 %v1507, 2147483648
    %v1509 = vmul.f32 %v1508, 1.442695
    %v1510 = vpow.pop %v1509
    %v1511 = vadd.f32 %v1510, 1.0
    %v1512 = vrcp.pop %v1511
    %v1513 = vmul.f32 1.0, %v1512
    %v1514 = vadd.f32 %v1423, %v1463
    %v1515 = vxor.u32 %v1514, 2147483648
    %v1516 = vmul.f32 %v1515, 1.442695
    %v1517 = vpow.pop %v1516
    %v1518 = vadd.f32 %v1517, 1.0
    %v1519 = vrcp.pop %v1518
    %v1520 = vmul.f32 1.0, %v1519
    %v1521 = vmul.f32 %v1513, %v1502
    %v1522 = vadd.f32 %v1424, %v1521
    %v1523 = vtanh.pop %v1522
    %v1524 = vsub.f32 1.0, %v1520
    %v1525 = vmul.f32 %v1524, %v1523
    %v1526 = vmul.f32 %v1520, %v1421
    %v1527 = vadd.f32 %v1525, %v1526
    %vm1528 = vcmp.gt.s32.totalorder %v489, 7
    %v1529 = vsel %vm1528, %v1527, %v1421
    %s1530 = smul.u32 4, 128
    %s1531 = smul.u32 %s1530, 1
    %s1532 = sshll.u32 %s1531, 4
    %1533 = dma.done [#allocation3], %s1532
    %v1534 = vld [vmem:[#allocation5] sm:$0xff]
    %v1535 = vld [vmem:[#allocation5 + $0x8] sm:$0xff]
    %v1536 = vld [vmem:[#allocation5 + $0x10] sm:$0xff]
    %v1537 = vld [vmem:[#allocation5 + $0x18] sm:$0xff]
    %v1538 = vld [vmem:[#allocation2] sm:$0xff]
    %v1539 = vld [vmem:[#allocation2 + $0x8] sm:$0xff]
    %v1540 = vld [vmem:[#allocation2 + $0x10] sm:$0xff]
    %v1541 = vld [vmem:[#allocation2 + $0x18] sm:$0xff]
    %v1542 = vld [vmem:[#allocation2 + $0x20] sm:$0xff]
    %v1543 = vld [vmem:[#allocation2 + $0x28] sm:$0xff]
    %v1544 = vld [vmem:[#allocation2 + $0x30] sm:$0xff]
    %v1545 = vld [vmem:[#allocation2 + $0x38] sm:$0xff]
    %v1546 = vld [vmem:[#allocation2 + $0x40] sm:$0xff]
    %v1547 = vld [vmem:[#allocation2 + $0x48] sm:$0xff]
    %v1548 = vld [vmem:[#allocation2 + $0x50] sm:$0xff]
    %v1549 = vld [vmem:[#allocation2 + $0x58] sm:$0xff]
    %v1550 = vld [vmem:[#allocation2 + $0x60] sm:$0xff]
    %v1551 = vld [vmem:[#allocation2 + $0x68] sm:$0xff]
    %v1552 = vld [vmem:[#allocation2 + $0x70] sm:$0xff]
    %v1553 = vld [vmem:[#allocation2 + $0x78] sm:$0xff]
    %v1554 = vld [vmem:[#allocation2 + $0x80] sm:$0xff]
    %v1555 = vld [vmem:[#allocation2 + $0x88] sm:$0xff]
    %v1556 = vld [vmem:[#allocation2 + $0x90] sm:$0xff]
    %v1557 = vld [vmem:[#allocation2 + $0x98] sm:$0xff]
    %v1558 = vld [vmem:[#allocation2 + $0xa0] sm:$0xff]
    %v1559 = vld [vmem:[#allocation2 + $0xa8] sm:$0xff]
    %v1560 = vld [vmem:[#allocation2 + $0xb0] sm:$0xff]
    %v1561 = vld [vmem:[#allocation2 + $0xb8] sm:$0xff]
    %v1562 = vld [vmem:[#allocation2 + $0xc0] sm:$0xff]
    %v1563 = vld [vmem:[#allocation2 + $0xc8] sm:$0xff]
    %v1564 = vld [vmem:[#allocation2 + $0xd0] sm:$0xff]
    %v1565 = vld [vmem:[#allocation2 + $0xd8] sm:$0xff]
    %v1566 = vld [vmem:[#allocation2 + $0xe0] sm:$0xff]
    %v1567 = vld [vmem:[#allocation2 + $0xe8] sm:$0xff]
    %v1568 = vld [vmem:[#allocation2 + $0xf0] sm:$0xff]
    %v1569 = vld [vmem:[#allocation2 + $0xf8] sm:$0xff]
    %v1570 = vld [vmem:[#allocation2 + $0x100] sm:$0xff]
    %v1571 = vld [vmem:[#allocation2 + $0x108] sm:$0xff]
    %v1572 = vld [vmem:[#allocation2 + $0x110] sm:$0xff]
    %v1573 = vld [vmem:[#allocation2 + $0x118] sm:$0xff]
    %v1574 = vld [vmem:[#allocation2 + $0x120] sm:$0xff]
    %v1575 = vld [vmem:[#allocation2 + $0x128] sm:$0xff]
    %v1576 = vld [vmem:[#allocation2 + $0x130] sm:$0xff]
    %v1577 = vld [vmem:[#allocation2 + $0x138] sm:$0xff]
    %v1578 = vld [vmem:[#allocation2 + $0x140] sm:$0xff]
    %v1579 = vld [vmem:[#allocation2 + $0x148] sm:$0xff]
    %v1580 = vld [vmem:[#allocation2 + $0x150] sm:$0xff]
    %v1581 = vld [vmem:[#allocation2 + $0x158] sm:$0xff]
    %v1582 = vld [vmem:[#allocation2 + $0x160] sm:$0xff]
    %v1583 = vld [vmem:[#allocation2 + $0x168] sm:$0xff]
    %v1584 = vld [vmem:[#allocation2 + $0x170] sm:$0xff]
    %v1585 = vld [vmem:[#allocation2 + $0x178] sm:$0xff]
    %v1586 = vld [vmem:[#allocation2 + $0x180] sm:$0xff]
    %v1587 = vld [vmem:[#allocation2 + $0x188] sm:$0xff]
    %v1588 = vld [vmem:[#allocation2 + $0x190] sm:$0xff]
    %v1589 = vld [vmem:[#allocation2 + $0x198] sm:$0xff]
    %v1590 = vld [vmem:[#allocation2 + $0x1a0] sm:$0xff]
    %v1591 = vld [vmem:[#allocation2 + $0x1a8] sm:$0xff]
    %v1592 = vld [vmem:[#allocation2 + $0x1b0] sm:$0xff]
    %v1593 = vld [vmem:[#allocation2 + $0x1b8] sm:$0xff]
    %v1594 = vld [vmem:[#allocation2 + $0x1c0] sm:$0xff]
    %v1595 = vld [vmem:[#allocation2 + $0x1c8] sm:$0xff]
    %v1596 = vld [vmem:[#allocation2 + $0x1d0] sm:$0xff]
    %v1597 = vld [vmem:[#allocation2 + $0x1d8] sm:$0xff]
    %v1598 = vld [vmem:[#allocation2 + $0x1e0] sm:$0xff]
    %v1599 = vld [vmem:[#allocation2 + $0x1e8] sm:$0xff]
    %v1600 = vld [vmem:[#allocation2 + $0x1f0] sm:$0xff]
    %v1601 = vld [vmem:[#allocation2 + $0x1f8] sm:$0xff]
    %v1602 = vld [vmem:[%s2] sm:$0x1]
    %v1604 = vlaneseq
    %v1605 = vshrl.u32 %v1604, 7
    %v1606 = vsub.s32 0, %v1605
    %v1607 = vrot.slane %v1602, %v1606
    %v1613 = vunpack.c.l.b16 %v1534
    %v1614 = vunpack.c.h.b16 %v1534
    %v1615 = vunpack.c.l.b16 %v1535
    %v1616 = vunpack.c.h.b16 %v1535
    %v1617 = vunpack.c.l.b16 %v1536
    %v1618 = vunpack.c.h.b16 %v1536
    %v1619 = vunpack.c.l.b16 %v1537
    %v1620 = vunpack.c.h.b16 %v1537
    %v1621 = vpack.c.b16 %v1613, %v1613
    %v1622 = vpack.c.b16 %v1614, %v1614
    %v1623 = vpack.c.b16 %v1615, %v1615
    %v1624 = vpack.c.b16 %v1616, %v1616
    %v1625 = vpack.c.b16 %v1617, %v1617
    %v1626 = vpack.c.b16 %v1618, %v1618
    %v1627 = vpack.c.b16 %v1619, %v1619
    %v1628 = vpack.c.b16 %v1620, %v1620
    %1637 = vmatprep.subr.bf16.mxu0 0
    %1638 = vmatpush1.bf16.msra.mxu0 %v1538
    %1639 = vmatprep.subr.bf16.mxu0 0
    %1640 = vmatpush1.bf16.msra.mxu0 %v1539
    %1641 = vmatprep.subr.bf16.mxu0 0
    %1642 = vmatpush1.bf16.msra.mxu0 %v1540
    %1643 = vmatprep.subr.bf16.mxu0 0
    %1644 = vmatpush1.bf16.msra.mxu0 %v1541
    %1645 = vmatprep.subr.bf16.mxu0 0
    %1646 = vmatpush1.bf16.msra.mxu0 %v1542
    %1647 = vmatprep.subr.bf16.mxu0 0
    %1648 = vmatpush1.bf16.msra.mxu0 %v1543
    %1649 = vmatprep.subr.bf16.mxu0 0
    %1650 = vmatpush1.bf16.msra.mxu0 %v1544
    %1651 = vmatprep.subr.bf16.mxu0 0
    %1652 = vmatpush1.bf16.msra.mxu0 %v1545
    %1653 = vmatprep.subr.bf16.mxu0 0
    %1654 = vmatpush1.bf16.msra.mxu0 %v1546
    %1655 = vmatprep.subr.bf16.mxu0 0
    %1656 = vmatpush1.bf16.msra.mxu0 %v1547
    %1657 = vmatprep.subr.bf16.mxu0 0
    %1658 = vmatpush1.bf16.msra.mxu0 %v1548
    %1659 = vmatprep.subr.bf16.mxu0 0
    %1660 = vmatpush1.bf16.msra.mxu0 %v1549
    %1661 = vmatprep.subr.bf16.mxu0 0
    %1662 = vmatpush1.bf16.msra.mxu0 %v1550
    %1663 = vmatprep.subr.bf16.mxu0 0
    %1664 = vmatpush1.bf16.msra.mxu0 %v1551
    %1665 = vmatprep.subr.bf16.mxu0 0
    %1666 = vmatpush1.bf16.msra.mxu0 %v1552
    %1667 = vmatprep.subr.bf16.mxu0 0
    %1668 = vmatpush1.bf16.msra.mxu0 %v1553
    %1669 = vmatprep.mubr.bf16.mxu0 %v1622
    %1670 = vmatmul.mubr.bf16.gmra.mrb[0].mxu0 %v1621
    %v1671 = vpop.f32.mrb[0].mxu0
    %v1672 = vadd.f32 %v1607, %v1671
    %v1673 = vpop.f32.mrb[0].mxu0
    %v1674 = vpop.f32.mrb[0].mxu0
    %v1675 = vpop.f32.mrb[0].mxu0
    %1676 = vdwg.mxu0
    %1677 = vmatprep.subr.bf16.mxu0 0
    %1678 = vmatpush1.bf16.msra.mxu0 %v1554
    %1679 = vmatprep.subr.bf16.mxu0 0
    %1680 = vmatpush1.bf16.msra.mxu0 %v1555
    %1681 = vmatprep.subr.bf16.mxu0 0
    %1682 = vmatpush1.bf16.msra.mxu0 %v1556
    %1683 = vmatprep.subr.bf16.mxu0 0
    %1684 = vmatpush1.bf16.msra.mxu0 %v1557
    %1685 = vmatprep.subr.bf16.mxu0 0
    %1686 = vmatpush1.bf16.msra.mxu0 %v1558
    %1687 = vmatprep.subr.bf16.mxu0 0
    %1688 = vmatpush1.bf16.msra.mxu0 %v1559
    %1689 = vmatprep.subr.bf16.mxu0 0
    %1690 = vmatpush1.bf16.msra.mxu0 %v1560
    %1691 = vmatprep.subr.bf16.mxu0 0
    %1692 = vmatpush1.bf16.msra.mxu0 %v1561
    %1693 = vmatprep.subr.bf16.mxu0 0
    %1694 = vmatpush1.bf16.msra.mxu0 %v1562
    %1695 = vmatprep.subr.bf16.mxu0 0
    %1696 = vmatpush1.bf16.msra.mxu0 %v1563
    %1697 = vmatprep.subr.bf16.mxu0 0
    %1698 = vmatpush1.bf16.msra.mxu0 %v1564
    %1699 = vmatprep.subr.bf16.mxu0 0
    %1700 = vmatpush1.bf16.msra.mxu0 %v1565
    %1701 = vmatprep.subr.bf16.mxu0 0
    %1702 = vmatpush1.bf16.msra.mxu0 %v1566
    %1703 = vmatprep.subr.bf16.mxu0 0
    %1704 = vmatpush1.bf16.msra.mxu0 %v1567
    %1705 = vmatprep.subr.bf16.mxu0 0
    %1706 = vmatpush1.bf16.msra.mxu0 %v1568
    %1707 = vmatprep.subr.bf16.mxu0 0
    %1708 = vmatpush1.bf16.msra.mxu0 %v1569
    %1709 = vmatprep.mubr.bf16.mxu0 %v1624
    %1710 = vmatmul.mubr.bf16.gmra.mrb[0].mxu0 %v1623
    %v1711 = vpop.f32.mrb[0].mxu0
    %v1712 = vadd.f32 %v1672, %v1711
    %v1713 = vpop.f32.mrb[0].mxu0
    %v1714 = vpop.f32.mrb[0].mxu0
    %v1715 = vpop.f32.mrb[0].mxu0
    %1716 = vdwg.mxu0
    %1717 = vmatprep.subr.bf16.mxu0 0
    %1718 = vmatpush1.bf16.msra.mxu0 %v1570
    %1719 = vmatprep.subr.bf16.mxu0 0
    %1720 = vmatpush1.bf16.msra.mxu0 %v1571
    %1721 = vmatprep.subr.bf16.mxu0 0
    %1722 = vmatpush1.bf16.msra.mxu0 %v1572
    %1723 = vmatprep.subr.bf16.mxu0 0
    %1724 = vmatpush1.bf16.msra.mxu0 %v1573
    %1725 = vmatprep.subr.bf16.mxu0 0
    %1726 = vmatpush1.bf16.msra.mxu0 %v1574
    %1727 = vmatprep.subr.bf16.mxu0 0
    %1728 = vmatpush1.bf16.msra.mxu0 %v1575
    %1729 = vmatprep.subr.bf16.mxu0 0
    %1730 = vmatpush1.bf16.msra.mxu0 %v1576
    %1731 = vmatprep.subr.bf16.mxu0 0
    %1732 = vmatpush1.bf16.msra.mxu0 %v1577
    %1733 = vmatprep.subr.bf16.mxu0 0
    %1734 = vmatpush1.bf16.msra.mxu0 %v1578
    %1735 = vmatprep.subr.bf16.mxu0 0
    %1736 = vmatpush1.bf16.msra.mxu0 %v1579
    %1737 = vmatprep.subr.bf16.mxu0 0
    %1738 = vmatpush1.bf16.msra.mxu0 %v1580
    %1739 = vmatprep.subr.bf16.mxu0 0
    %1740 = vmatpush1.bf16.msra.mxu0 %v1581
    %1741 = vmatprep.subr.bf16.mxu0 0
    %1742 = vmatpush1.bf16.msra.mxu0 %v1582
    %1743 = vmatprep.subr.bf16.mxu0 0
    %1744 = vmatpush1.bf16.msra.mxu0 %v1583
    %1745 = vmatprep.subr.bf16.mxu0 0
    %1746 = vmatpush1.bf16.msra.mxu0 %v1584
    %1747 = vmatprep.subr.bf16.mxu0 0
    %1748 = vmatpush1.bf16.msra.mxu0 %v1585
    %1749 = vmatprep.mubr.bf16.mxu0 %v1626
    %1750 = vmatmul.mubr.bf16.gmra.mrb[0].mxu0 %v1625
    %v1751 = vpop.f32.mrb[0].mxu0
    %v1752 = vadd.f32 %v1712, %v1751
    %v1753 = vpop.f32.mrb[0].mxu0
    %v1754 = vpop.f32.mrb[0].mxu0
    %v1755 = vpop.f32.mrb[0].mxu0
    %1756 = vdwg.mxu0
    %1757 = vmatprep.subr.bf16.mxu0 0
    %1758 = vmatpush1.bf16.msra.mxu0 %v1586
    %1759 = vmatprep.subr.bf16.mxu0 0
    %1760 = vmatpush1.bf16.msra.mxu0 %v1587
    %1761 = vmatprep.subr.bf16.mxu0 0
    %1762 = vmatpush1.bf16.msra.mxu0 %v1588
    %1763 = vmatprep.subr.bf16.mxu0 0
    %1764 = vmatpush1.bf16.msra.mxu0 %v1589
    %1765 = vmatprep.subr.bf16.mxu0 0
    %1766 = vmatpush1.bf16.msra.mxu0 %v1590
    %1767 = vmatprep.subr.bf16.mxu0 0
    %1768 = vmatpush1.bf16.msra.mxu0 %v1591
    %1769 = vmatprep.subr.bf16.mxu0 0
    %1770 = vmatpush1.bf16.msra.mxu0 %v1592
    %1771 = vmatprep.subr.bf16.mxu0 0
    %1772 = vmatpush1.bf16.msra.mxu0 %v1593
    %1773 = vmatprep.subr.bf16.mxu0 0
    %1774 = vmatpush1.bf16.msra.mxu0 %v1594
    %1775 = vmatprep.subr.bf16.mxu0 0
    %1776 = vmatpush1.bf16.msra.mxu0 %v1595
    %1777 = vmatprep.subr.bf16.mxu0 0
    %1778 = vmatpush1.bf16.msra.mxu0 %v1596
    %1779 = vmatprep.subr.bf16.mxu0 0
    %1780 = vmatpush1.bf16.msra.mxu0 %v1597
    %1781 = vmatprep.subr.bf16.mxu0 0
    %1782 = vmatpush1.bf16.msra.mxu0 %v1598
    %1783 = vmatprep.subr.bf16.mxu0 0
    %1784 = vmatpush1.bf16.msra.mxu0 %v1599
    %1785 = vmatprep.subr.bf16.mxu0 0
    %1786 = vmatpush1.bf16.msra.mxu0 %v1600
    %1787 = vmatprep.subr.bf16.mxu0 0
    %1788 = vmatpush1.bf16.msra.mxu0 %v1601
    %1789 = vmatprep.mubr.bf16.mxu0 %v1628
    %1790 = vmatmul.mubr.bf16.gmra.mrb[0].mxu0 %v1627
    %v1791 = vpop.f32.mrb[0].mxu0
    %v1792 = vadd.f32 %v1752, %v1791
    %v1793 = vpop.f32.mrb[0].mxu0
    %v1794 = vpop.f32.mrb[0].mxu0
    %v1795 = vpop.f32.mrb[0].mxu0
    %1796 = vdwg.mxu0
    %v1797 = vtanh.pop %v1792
    %v1798 = vmul.f32 %v1797, %v1529
    %v1799 = vpack.c.bf16 %v1798, %v1798
    %v1800 = vld [vmem:[#allocation13] sm:$0xf]
    %v1801 = vld [vmem:[#allocation13 + $0x4] sm:$0xf]
    %v1802 = vld [vmem:[#allocation13 + $0x8] sm:$0xf]
    %v1803 = vld [vmem:[#allocation13 + $0xc] sm:$0xf]
    %v1804 = vld [vmem:[#allocation13 + $0x10] sm:$0xf]
    %v1805 = vld [vmem:[#allocation13 + $0x14] sm:$0xf]
    %v1806 = vld [vmem:[#allocation13 + $0x18] sm:$0xf]
    %v1807 = vld [vmem:[#allocation13 + $0x1c] sm:$0xf]
    %v1808 = vld [vmem:[#allocation13 + $0x20] sm:$0xf]
    %v1809 = vld [vmem:[#allocation13 + $0x24] sm:$0xf]
    %v1810 = vld [vmem:[#allocation13 + $0x28] sm:$0xf]
    %v1811 = vld [vmem:[#allocation13 + $0x2c] sm:$0xf]
    %v1812 = vld [vmem:[#allocation13 + $0x30] sm:$0xf]
    %v1813 = vld [vmem:[#allocation13 + $0x34] sm:$0xf]
    %v1814 = vld [vmem:[#allocation13 + $0x38] sm:$0xf]
    %v1815 = vld [vmem:[#allocation13 + $0x3c] sm:$0xf]
    %v1816 = vld [vmem:[%s10] sm:$0x1]
    %v1818 = vlaneseq
    %v1819 = vshrl.u32 %v1818, 7
    %v1820 = vsub.s32 0, %v1819
    %v1821 = vrot.slane %v1816, %v1820
    %v1839 = vunpack.c.l.b16 %v1800
    %v1840 = vunpack.c.l.b16 %v1801
    %v1841 = vunpack.c.l.b16 %v1802
    %v1842 = vunpack.c.l.b16 %v1803
    %v1843 = vunpack.c.l.b16 %v1804
    %v1844 = vunpack.c.l.b16 %v1805
    %v1845 = vunpack.c.l.b16 %v1806
    %v1846 = vunpack.c.l.b16 %v1807
    %v1847 = vunpack.c.l.b16 %v1808
    %v1848 = vunpack.c.l.b16 %v1809
    %v1849 = vunpack.c.l.b16 %v1810
    %v1850 = vunpack.c.l.b16 %v1811
    %v1851 = vunpack.c.l.b16 %v1812
    %v1852 = vunpack.c.l.b16 %v1813
    %v1853 = vunpack.c.l.b16 %v1814
    %v1854 = vunpack.c.l.b16 %v1815
    %v1855 = vpack.c.b16 %v1840, %v1839
    %v1856 = vpack.c.b16 %v1842, %v1841
    %v1857 = vpack.c.b16 %v1844, %v1843
    %v1858 = vpack.c.b16 %v1846, %v1845
    %v1859 = vpack.c.b16 %v1848, %v1847
    %v1860 = vpack.c.b16 %v1850, %v1849
    %v1861 = vpack.c.b16 %v1852, %v1851
    %v1862 = vpack.c.b16 %v1854, %v1853
    %1871 = vmatprep.subr.bf16.mxu0 0
    %1872 = vmatpush1.bf16.msra.mxu0 %v1855
    %1873 = vmatprep.subr.bf16.mxu0 0
    %1874 = vmatpush1.bf16.msra.mxu0 %v1856
    %1875 = vmatprep.subr.bf16.mxu0 0
    %1876 = vmatpush1.bf16.msra.mxu0 %v1857
    %1877 = vmatprep.subr.bf16.mxu0 0
    %1878 = vmatpush1.bf16.msra.mxu0 %v1858
    %1879 = vmatprep.subr.bf16.mxu0 0
    %1880 = vmatpush1.bf16.msra.mxu0 %v1859
    %1881 = vmatprep.subr.bf16.mxu0 0
    %1882 = vmatpush1.bf16.msra.mxu0 %v1860
    %1883 = vmatprep.subr.bf16.mxu0 0
    %1884 = vmatpush1.bf16.msra.mxu0 %v1861
    %1885 = vmatprep.subr.bf16.mxu0 0
    %1886 = vmatpush1.bf16.msra.mxu0 %v1862
    %1887 = vmatprep.subr.bf16.mxu0 0
    %1888 = vmatpush1.bf16.msra.mxu0 0
    %1889 = vmatprep.subr.bf16.mxu0 0
    %1890 = vmatpush1.bf16.msra.mxu0 0
    %1891 = vmatprep.subr.bf16.mxu0 0
    %1892 = vmatpush1.bf16.msra.mxu0 0
    %1893 = vmatprep.subr.bf16.mxu0 0
    %1894 = vmatpush1.bf16.msra.mxu0 0
    %1895 = vmatprep.subr.bf16.mxu0 0
    %1896 = vmatpush1.bf16.msra.mxu0 0
    %1897 = vmatprep.subr.bf16.mxu0 0
    %1898 = vmatpush1.bf16.msra.mxu0 0
    %1899 = vmatprep.subr.bf16.mxu0 0
    %1900 = vmatpush1.bf16.msra.mxu0 0
    %1901 = vmatprep.subr.bf16.mxu0 0
    %1902 = vmatpush1.bf16.msra.mxu0 0
    %1903 = vmatprep.mubr.bf16.mxu0 0
    %1904 = vmatmul.mubr.bf16.gmra.mrb[0].mxu0 %v1799
    %v1905 = vpop.f32.mrb[0].mxu0
    %v1906 = vadd.f32 %v1821, %v1905
    %v1907 = vpop.f32.mrb[0].mxu0
    %v1908 = vpop.f32.mrb[0].mxu0
    %v1909 = vpop.f32.mrb[0].mxu0
    %1910 = vdwg.mxu0
    %1911 = vst [vmem:[#allocation14] sm:$0xff] %v1906
    // Predicated region
    $region66: #{tpu_custom_call.1} parent=1 // pred_check
      _
    $region67: #{tpu_custom_call.1} parent=1 // pred_check_branch
      %1913 = sbr.rel (0) target = $region69
    $region68: #{tpu_custom_call.1} parent=1 // pred_region
      %s1915 = ssub.s32 128, 128
      %1916 = vsyncadd [#allocation7], %s1915
      %s1918 = sshll.u32 [#allocation14], 4
      %s1919 = int_to_ptr.vmem [resolvable:$true] %s1918
      %1921 = dma.vmem_to_hbm [thread:$0]  %s1919, 128, %s11, [#allocation7]
    $region69: #{tpu_custom_call.1} parent=1 // pred_fallthru
      _
    // Predicated region
    $region70: #{tpu_custom_call.1} parent=1 // pred_check
      _
    $region71: #{tpu_custom_call.1} parent=1 // pred_check_branch
      %1923 = sbr.rel (0) target = $region73
    $region72: #{tpu_custom_call.1} parent=1 // pred_region
      %1924 = dma.done [#allocation7], 128
    $region73: #{tpu_custom_call.1} parent=1 // pred_fallthru
      _
    %1925 = vsyncpa [#allocation6], 1
    %1926 = vsyncpa [#allocation9], 1
    %1927 = vsyncpa [#allocation12], 1
    %1928 = vsyncpa [#allocation7], 1
  %1929 = vsyncmov [#allocation3]
  %s1930 = vpop.sfrf %1929
  %p1931 = scmp.eq.s32.totalorder %s1930, 0
  %p1932 = pneg %p1931
  %1934 = shalt.err (%p1932)

</llo_original>
